<compile_context>
chip_gen: v7x
topology: tpu7x:2x2x1
jax: 0.10.0
libtpu: 0.0.40
codegen_flags: <defaults>
</compile_context>

<pallas_src>
import jax
import jax.numpy as jnp
from jax.experimental import pallas as pl
from jax.experimental.pallas import tpu as pltpu

C, H, W = 3, 224, 224
K_TOTAL = C * H * W                     # 150528 = 2 * 588 * 128
NSPLIT = 2                              # K-reduction split (1 slice per TC on v7x)
LANES = 128
ROWS = K_TOTAL // (NSPLIT * LANES)      # 588 sublane rows per slice


def _conv_as_dot_kernel(x_ref, w_ref, o_ref):
    # x_ref: (N, 1, ROWS, 128), w_ref: (1, ROWS, 128), o_ref: (1, N, 1)
    xb = x_ref[...] + 1.0                     # fused "x + ones_like(x)"
    prod = xb * w_ref[...]                    # (N, 1, ROWS, 128), VPU only
    partial = jnp.sum(prod, axis=(2, 3))      # (N, 1) f32 partial dot product
    o_ref[...] = partial[None]                # (1, N, 1)


def module_test2_forward(x_nchw, weight):
    """x_nchw: (N, 3, 224, 224) f32; weight: (1, 3, 224, 224) f32 -> (N, 1, 1, 1)."""
    n = x_nchw.shape[0]
    x4 = x_nchw.reshape(n, NSPLIT, ROWS, LANES)   # free, contiguous reshape
    w3 = weight.reshape(NSPLIT, ROWS, LANES)      # lane/sublane-dense weight

    partials = pl.pallas_call(
        _conv_as_dot_kernel,
        out_shape=jax.ShapeDtypeStruct((NSPLIT, n, 1), jnp.float32),
        grid_spec=pltpu.PrefetchScalarGridSpec(
            num_scalar_prefetch=0,
            grid=(NSPLIT,),
            in_specs=[
                pl.BlockSpec((n, 1, ROWS, LANES), lambda p: (0, p, 0, 0)),
                pl.BlockSpec((1, ROWS, LANES), lambda p: (p, 0, 0)),
            ],
            out_specs=pl.BlockSpec((1, n, 1), lambda p: (p, 0, 0)),
        ),
        compiler_params=pltpu.CompilerParams(
            dimension_semantics=("parallel",),   # both TCs on v7x; harmless elsewhere
        ),
    )(x4, w3)

    # Combine the per-slice partial sums and apply fused "res + ones_like(res)".
    return (jnp.sum(partials, axis=0) + 1.0).reshape(n, 1, 1, 1)


if __name__ == "__main__":
    key = jax.random.PRNGKey(0)
    kx, kw = jax.random.split(key)

    # Shapes fixed by the module: weight is (1, 3, 224, 224), so the input must
    # be NCHW with C=3, H=W=224 (conv kernel == input spatial extent). Batch=2.
    N = 2
    x = jax.random.normal(kx, (N, C, H, W), dtype=jnp.float32)
    weight = jax.random.normal(kw, (1, C, H, W), dtype=jnp.float32)

    fwd = jax.jit(module_test2_forward)
    y = jax.block_until_ready(fwd(x, weight))

    # Pure-JAX reference for sanity.
    ref = jnp.sum((x + 1.0) * weight[0][None], axis=(1, 2, 3)).reshape(N, 1, 1, 1) + 1.0
    assert y.shape == (N, 1, 1, 1)
    assert jnp.allclose(y, ref, rtol=1e-3, atol=1e-2), (y, ref)

    print("KERNEL_OK")
</pallas_src>

<mosaic_0001>
module attributes {stable_mosaic.version = 11 : i64} {
  func.func @_conv_as_dot_kernel(%arg0: i32, %arg1: memref<2x1x588x128xf32, #tpu.memory_space<vmem>>, %arg2: memref<1x588x128xf32, #tpu.memory_space<vmem>>, %arg3: memref<1x2x1xf32, #tpu.memory_space<vmem>>) attributes {dimension_semantics = [#tpu.dimension_semantics<parallel>], iteration_bounds = array<i64: 2>, scalar_prefetch = 0 : i64, scratch_operands = 0 : i64, tpu.core_type = #tpu.core_type<tc>, window_params = [{transform_indices = @transform_0, window_bounds = array<i64: 2, 1, 588, 128>}, {transform_indices = @transform_1, window_bounds = array<i64: 1, 588, 128>}, {transform_indices = @transform_2, window_bounds = array<i64: 1, 2, 1>}]} {
    %c0 = arith.constant 0 : index
    %c0_0 = arith.constant 0 : index
    %c0_1 = arith.constant 0 : index
    %c0_2 = arith.constant 0 : index
    %0 = vector.load %arg1[%c0, %c0_0, %c0_1, %c0_2] : memref<2x1x588x128xf32, #tpu.memory_space<vmem>>, vector<2x1x588x128xf32>
    %cst = arith.constant 1.000000e+00 : f32
    %1 = vector.broadcast %cst : f32 to vector<2x1x588x128xf32>
    %2 = arith.addf %0, %1 : vector<2x1x588x128xf32>
    %c0_3 = arith.constant 0 : index
    %c0_4 = arith.constant 0 : index
    %c0_5 = arith.constant 0 : index
    %3 = vector.load %arg2[%c0_3, %c0_4, %c0_5] : memref<1x588x128xf32, #tpu.memory_space<vmem>>, vector<1x588x128xf32>
    %4 = vector.shape_cast %3 : vector<1x588x128xf32> to vector<1x1x588x128xf32>
    %5 = vector.broadcast %4 : vector<1x1x588x128xf32> to vector<2x1x588x128xf32>
    %6 = arith.mulf %2, %5 : vector<2x1x588x128xf32>
    %cst_6 = arith.constant dense<0.000000e+00> : vector<2x1xf32>
    %7 = vector.multi_reduction <add>, %6, %cst_6 [2, 3] : vector<2x1x588x128xf32> to vector<2x1xf32>
    %8 = vector.shape_cast %7 : vector<2x1xf32> to vector<1x2x1xf32>
    %c0_7 = arith.constant 0 : index
    %c0_8 = arith.constant 0 : index
    %c0_9 = arith.constant 0 : index
    %9 = vector.load %arg3[%c0_7, %c0_8, %c0_9] : memref<1x2x1xf32, #tpu.memory_space<vmem>>, vector<1x2x1xf32>
    tpu.vector_store %arg3[%c0_7, %c0_8, %c0_9], %8 {strides = array<i32>} : memref<1x2x1xf32, #tpu.memory_space<vmem>>, vector<1x2x1xf32>,
    return
  }
  func.func @transform_0(%arg0: i32) -> (i32, i32, i32, i32) {
    %c0_i32 = arith.constant 0 : i32
    %c0_i32_0 = arith.constant 0 : i32
    %c0_i32_1 = arith.constant 0 : i32
    %c0_i32_2 = arith.constant 0 : i32
    return %c0_i32, %arg0, %c0_i32_0, %c0_i32_1 : i32, i32, i32, i32
  }
  func.func @transform_1(%arg0: i32) -> (i32, i32, i32) {
    %c0_i32 = arith.constant 0 : i32
    %c0_i32_0 = arith.constant 0 : i32
    %c0_i32_1 = arith.constant 0 : i32
    return %arg0, %c0_i32, %c0_i32_0 : i32, i32, i32
  }
  func.func @transform_2(%arg0: i32) -> (i32, i32, i32) {
    %c0_i32 = arith.constant 0 : i32
    %c0_i32_0 = arith.constant 0 : i32
    %c0_i32_1 = arith.constant 0 : i32
    return %arg0, %c0_i32, %c0_i32_0 : i32, i32, i32
  }
}

</mosaic_0001>

<llo_original>
// kernel: module_test2_forward.1
$region0: #{module_test2_forward.1}
  #allocation0 [shape = 'u32[]', space=smem, size = 0x4, offset = 0x4, fixed_abs, tag = 'smem constant byte address 0x4 - core index']
  #allocation1 [shape = 'u32[144,128]{1,0:T(1,128)}', space=vmem, size = 0x12000, scoped, tag = 'internal scratch']
  %s0 = inlined_call_operand.vmem [shape: f32[2,2,588,128], index: 0, kind: input, shape index: {}]
  %s1 = inlined_call_operand.vmem [shape: f32[2,588,128], index: 1, kind: input, shape index: {}]
  %s2 = inlined_call_operand.vmem [shape: f32[2,2,1], index: 2, kind: output, shape index: {}]
  %s3 = sld [smem:[#allocation0]]
  $region79: #{module_test2_forward.1} parent=0
    _
  %s5 = ssub.s32 1, %s3
  %s6 = scalar_select 0, %s5, %s3
  $region1: #{module_test2_forward.1} parent=0
    #allocation2 [shape = 'u8[1212416]{0}', space=vmem, size = 0x128000, scoped, tag = 'input window, operand 0']
    loop: start=0, step=1, limit=4
    $region2: #{module_test2_forward.1} parent=1 // loop_pre_header
      _
    $region3: #{module_test2_forward.1} parent=1 // loop_header
      %s8 = sphi 0, %s12
      %p9 = scmp.ge.s32.totalorder %s8, 4
      %s18 = sphi 0, %s20
      %s21 = sphi 0, %s18
      %s22 = sphi 0, %s21
      %s38 = sphi 0, %s22
      %s44 = sphi 0, %s46
      %s47 = sphi 0, %s44
      %s48 = sphi 0, %s47
      %s64 = sphi 0, %s48
      %s70 = sphi 0, %s72
      %s73 = sphi 0, %s70
      %s74 = sphi 0, %s73
      %s90 = sphi 0, %s74
    $region4: #{module_test2_forward.1} parent=1 // loop_header_branch
      %11 = sbr.rel (%p9) target = $region8
    $region5: #{module_test2_forward.1} parent=1 // loop_body
      %s13 = ssub.s32 %s8, 1
      %s14 = ssub.s32 %s8, 2
      %s15 = sadd.s32 %s8, 1
      %s16 = ssub.s32 %s8, %s15
      %p17 = scmp.eq.s32.totalorder %s16, 0
      %s19 = sadd.s32 %s18, 1
      %s20 = scalar_select %p17, %s18, %s19
      %p23 = pneg %p17
      %p24 = scmp.eq.s32.totalorder %s8, 1
      %p25 = por %p23, %p24
      %p26 = scmp.ne.s32.totalorder %s18, %s21
      %p27 = scmp.eq.s32.totalorder %s8, 0
      %p28 = por %p26, %p27
      %p29 = scmp.ne.s32.totalorder %s18, %s21
      %p30 = scmp.eq.s32.totalorder %s13, 1
      %p31 = por %p29, %p30
      %p32 = scmp.ne.s32.totalorder %s21, %s22
      %p33 = scmp.eq.s32.totalorder %s13, 0
      %p34 = por %p32, %p33
      %p35 = scmp.ne.s32.totalorder %s21, %s22
      %p36 = scmp.eq.s32.totalorder %s14, 1
      %p37 = por %p35, %p36
      %p39 = scmp.ne.s32.totalorder %s22, %s38
      %p40 = scmp.eq.s32.totalorder %s14, 0
      %p41 = por %p39, %p40
      %s42 = ssub.s32 %s8, %s15
      %p43 = scmp.eq.s32.totalorder %s42, 0
      %s45 = sadd.s32 %s44, 1
      %s46 = scalar_select %p43, %s44, %s45
      %p49 = pneg %p43
      %p50 = scmp.eq.s32.totalorder %s8, 1
      %p51 = por %p49, %p50
      %p52 = scmp.ne.s32.totalorder %s44, %s47
      %p53 = scmp.eq.s32.totalorder %s8, 0
      %p54 = por %p52, %p53
      %p55 = scmp.ne.s32.totalorder %s44, %s47
      %p56 = scmp.eq.s32.totalorder %s13, 1
      %p57 = por %p55, %p56
      %p58 = scmp.ne.s32.totalorder %s47, %s48
      %p59 = scmp.eq.s32.totalorder %s13, 0
      %p60 = por %p58, %p59
      %p61 = scmp.ne.s32.totalorder %s47, %s48
      %p62 = scmp.eq.s32.totalorder %s14, 1
      %p63 = por %p61, %p62
      %p65 = scmp.ne.s32.totalorder %s48, %s64
      %p66 = scmp.eq.s32.totalorder %s14, 0
      %p67 = por %p65, %p66
      %s68 = ssub.s32 %s8, %s15
      %p69 = scmp.eq.s32.totalorder %s68, 0
      %s71 = sadd.s32 %s70, 1
      %s72 = scalar_select %p69, %s70, %s71
      %p75 = pneg %p69
      %p76 = scmp.eq.s32.totalorder %s8, 1
      %p77 = por %p75, %p76
      %p78 = scmp.ne.s32.totalorder %s70, %s73
      %p79 = scmp.eq.s32.totalorder %s8, 0
      %p80 = por %p78, %p79
      %p81 = scmp.ne.s32.totalorder %s70, %s73
      %p82 = scmp.eq.s32.totalorder %s13, 1
      %p83 = por %p81, %p82
      %p84 = scmp.ne.s32.totalorder %s73, %s74
      %p85 = scmp.eq.s32.totalorder %s13, 0
      %p86 = por %p84, %p85
      %p87 = scmp.ne.s32.totalorder %s73, %s74
      %p88 = scmp.eq.s32.totalorder %s14, 1
      %p89 = por %p87, %p88
      %p91 = scmp.ne.s32.totalorder %s74, %s90
      %p92 = scmp.eq.s32.totalorder %s14, 0
      %p93 = por %p91, %p92
      %p94 = scmp.le.s32.totalorder 1, %s8
      %p95 = scmp.lt.s32.totalorder %s8, 3
      %p96 = pnand %p94, %p95
      %p97 = pneg %p96
      // Predicated region
      $region9: #{module_test2_forward.1} parent=5 // pred_check
        _
      $region10: #{module_test2_forward.1} parent=5 // pred_check_branch
        %99 = sbr.rel (%p96) target = $region12
      $region11: #{module_test2_forward.1} parent=5 // pred_region
        %s100 = ssub.s32 %s8, 1
      $region12: #{module_test2_forward.1} parent=5 // pred_fallthru
        _
      %p101 = scmp.lt.s32.totalorder %s8, 2
      // Predicated region
      $region13: #{module_test2_forward.1} parent=5 // pred_check
        %p102 = pneg %p101
      $region14: #{module_test2_forward.1} parent=5 // pred_check_branch
        %104 = sbr.rel (%p102) target = $region16
      $region15: #{module_test2_forward.1} parent=5 // pred_region
        // Predicated region
        $region17: #{module_test2_forward.1} parent=15 // pred_check
          %p105 = pneg %p28
        $region18: #{module_test2_forward.1} parent=15 // pred_check_branch
          %107 = sbr.rel (%p105) target = $region20
        $region19: #{module_test2_forward.1} parent=15 // pred_region
          %s108 = sand.u32 %s18, 1
          %s109 = sand.u32 %s18, 1
          %s110 = smul.addr %s109, 1184
          %s111 = scalar_lea.vmem [#allocation2], %s110
          %s112 = smul.addr %s8, 74
          %s113 = smul.addr %s112, 8
          %s114 = scalar_lea.vmem %s0, %s113
          // Predicated region
          $region21: #{module_test2_forward.1} parent=19 // pred_check
            _
          $region22: #{module_test2_forward.1} parent=19 // pred_check_branch
            %116 = sbr.rel (0) target = $region24
          $region23: #{module_test2_forward.1} parent=19 // pred_region
            // Predicated region
            $region25: #{module_test2_forward.1} parent=23 // pred_check
              _
            $region26: #{module_test2_forward.1} parent=23 // pred_check_branch
              %118 = sbr.rel (0) target = $region28
            $region27: #{module_test2_forward.1} parent=23 // pred_region
              // Predicated region
              $region40: #{module_test2_forward.1} parent=27 // pred_check
                _
              $region41: #{module_test2_forward.1} parent=27 // pred_check_branch
                %427 = sbr.rel (0) target = $region43
              $region42: #{module_test2_forward.1} parent=27 // pred_region
                loop: start=0, step=1, limit=1
                $region44: #{module_test2_forward.1} parent=42 // loop_pre_header
                  _
                $region45: #{module_test2_forward.1} parent=42 // loop_header
                  %s429 = sphi 0, %s433
                  %p430 = scmp.ge.s32.totalorder %s429, 1
                  %s434 = sphi %s114, %s114
                  %s435 = sphi %s111, %s111
                $region46: #{module_test2_forward.1} parent=42 // loop_header_branch
                  %432 = sbr.rel (%p430) target = $region50
                $region47: #{module_test2_forward.1} parent=42 // loop_body
                  %v436 = vld [vmem:[%s434] sm:$0xff]
                  %437 = vst [vmem:[%s435] sm:$0xff] %v436
                  %v438 = vld [vmem:[%s434 + $0x8] sm:$0xff]
                  %439 = vst [vmem:[%s435 + $0x8] sm:$0xff] %v438
                  %v440 = vld [vmem:[%s434 + $0x10] sm:$0xff]
                  %441 = vst [vmem:[%s435 + $0x10] sm:$0xff] %v440
                  %v442 = vld [vmem:[%s434 + $0x18] sm:$0xff]
                  %443 = vst [vmem:[%s435 + $0x18] sm:$0xff] %v442
                  %v444 = vld [vmem:[%s434 + $0x20] sm:$0xff]
                  %445 = vst [vmem:[%s435 + $0x20] sm:$0xff] %v444
                  %v446 = vld [vmem:[%s434 + $0x28] sm:$0xff]
                  %447 = vst [vmem:[%s435 + $0x28] sm:$0xff] %v446
                  %v448 = vld [vmem:[%s434 + $0x30] sm:$0xff]
                  %449 = vst [vmem:[%s435 + $0x30] sm:$0xff] %v448
                  %v450 = vld [vmem:[%s434 + $0x38] sm:$0xff]
                  %451 = vst [vmem:[%s435 + $0x38] sm:$0xff] %v450
                  %v452 = vld [vmem:[%s434 + $0x40] sm:$0xff]
                  %453 = vst [vmem:[%s435 + $0x40] sm:$0xff] %v452
                  %v454 = vld [vmem:[%s434 + $0x48] sm:$0xff]
                  %455 = vst [vmem:[%s435 + $0x48] sm:$0xff] %v454
                  %v456 = vld [vmem:[%s434 + $0x50] sm:$0xff]
                  %457 = vst [vmem:[%s435 + $0x50] sm:$0xff] %v456
                  %v458 = vld [vmem:[%s434 + $0x58] sm:$0xff]
                  %459 = vst [vmem:[%s435 + $0x58] sm:$0xff] %v458
                  %v460 = vld [vmem:[%s434 + $0x60] sm:$0xff]
                  %461 = vst [vmem:[%s435 + $0x60] sm:$0xff] %v460
                  %v462 = vld [vmem:[%s434 + $0x68] sm:$0xff]
                  %463 = vst [vmem:[%s435 + $0x68] sm:$0xff] %v462
                  %v464 = vld [vmem:[%s434 + $0x70] sm:$0xff]
                  %465 = vst [vmem:[%s435 + $0x70] sm:$0xff] %v464
                  %v466 = vld [vmem:[%s434 + $0x78] sm:$0xff]
                  %467 = vst [vmem:[%s435 + $0x78] sm:$0xff] %v466
                  %v468 = vld [vmem:[%s434 + $0x80] sm:$0xff]
                  %469 = vst [vmem:[%s435 + $0x80] sm:$0xff] %v468
                  %v470 = vld [vmem:[%s434 + $0x88] sm:$0xff]
                  %471 = vst [vmem:[%s435 + $0x88] sm:$0xff] %v470
                  %v472 = vld [vmem:[%s434 + $0x90] sm:$0xff]
                  %473 = vst [vmem:[%s435 + $0x90] sm:$0xff] %v472
                  %v474 = vld [vmem:[%s434 + $0x98] sm:$0xff]
                  %475 = vst [vmem:[%s435 + $0x98] sm:$0xff] %v474
                  %v476 = vld [vmem:[%s434 + $0xa0] sm:$0xff]
                  %477 = vst [vmem:[%s435 + $0xa0] sm:$0xff] %v476
                  %v478 = vld [vmem:[%s434 + $0xa8] sm:$0xff]
                  %479 = vst [vmem:[%s435 + $0xa8] sm:$0xff] %v478
                  %v480 = vld [vmem:[%s434 + $0xb0] sm:$0xff]
                  %481 = vst [vmem:[%s435 + $0xb0] sm:$0xff] %v480
                  %v482 = vld [vmem:[%s434 + $0xb8] sm:$0xff]
                  %483 = vst [vmem:[%s435 + $0xb8] sm:$0xff] %v482
                  %v484 = vld [vmem:[%s434 + $0xc0] sm:$0xff]
                  %485 = vst [vmem:[%s435 + $0xc0] sm:$0xff] %v484
                  %v486 = vld [vmem:[%s434 + $0xc8] sm:$0xff]
                  %487 = vst [vmem:[%s435 + $0xc8] sm:$0xff] %v486
                  %v488 = vld [vmem:[%s434 + $0xd0] sm:$0xff]
                  %489 = vst [vmem:[%s435 + $0xd0] sm:$0xff] %v488
                  %v490 = vld [vmem:[%s434 + $0xd8] sm:$0xff]
                  %491 = vst [vmem:[%s435 + $0xd8] sm:$0xff] %v490
                  %v492 = vld [vmem:[%s434 + $0xe0] sm:$0xff]
                  %493 = vst [vmem:[%s435 + $0xe0] sm:$0xff] %v492
                  %v494 = vld [vmem:[%s434 + $0xe8] sm:$0xff]
                  %495 = vst [vmem:[%s435 + $0xe8] sm:$0xff] %v494
                  %v496 = vld [vmem:[%s434 + $0xf0] sm:$0xff]
                  %497 = vst [vmem:[%s435 + $0xf0] sm:$0xff] %v496
                  %v498 = vld [vmem:[%s434 + $0xf8] sm:$0xff]
                  %499 = vst [vmem:[%s435 + $0xf8] sm:$0xff] %v498
                  %v500 = vld [vmem:[%s434 + $0x100] sm:$0xff]
                  %501 = vst [vmem:[%s435 + $0x100] sm:$0xff] %v500
                  %v502 = vld [vmem:[%s434 + $0x108] sm:$0xff]
                  %503 = vst [vmem:[%s435 + $0x108] sm:$0xff] %v502
                  %v504 = vld [vmem:[%s434 + $0x110] sm:$0xff]
                  %505 = vst [vmem:[%s435 + $0x110] sm:$0xff] %v504
                  %v506 = vld [vmem:[%s434 + $0x118] sm:$0xff]
                  %507 = vst [vmem:[%s435 + $0x118] sm:$0xff] %v506
                  %v508 = vld [vmem:[%s434 + $0x120] sm:$0xff]
                  %509 = vst [vmem:[%s435 + $0x120] sm:$0xff] %v508
                  %v510 = vld [vmem:[%s434 + $0x128] sm:$0xff]
                  %511 = vst [vmem:[%s435 + $0x128] sm:$0xff] %v510
                  %v512 = vld [vmem:[%s434 + $0x130] sm:$0xff]
                  %513 = vst [vmem:[%s435 + $0x130] sm:$0xff] %v512
                  %v514 = vld [vmem:[%s434 + $0x138] sm:$0xff]
                  %515 = vst [vmem:[%s435 + $0x138] sm:$0xff] %v514
                  %v516 = vld [vmem:[%s434 + $0x140] sm:$0xff]
                  %517 = vst [vmem:[%s435 + $0x140] sm:$0xff] %v516
                  %v518 = vld [vmem:[%s434 + $0x148] sm:$0xff]
                  %519 = vst [vmem:[%s435 + $0x148] sm:$0xff] %v518
                  %v520 = vld [vmem:[%s434 + $0x150] sm:$0xff]
                  %521 = vst [vmem:[%s435 + $0x150] sm:$0xff] %v520
                  %v522 = vld [vmem:[%s434 + $0x158] sm:$0xff]
                  %523 = vst [vmem:[%s435 + $0x158] sm:$0xff] %v522
                  %v524 = vld [vmem:[%s434 + $0x160] sm:$0xff]
                  %525 = vst [vmem:[%s435 + $0x160] sm:$0xff] %v524
                  %v526 = vld [vmem:[%s434 + $0x168] sm:$0xff]
                  %527 = vst [vmem:[%s435 + $0x168] sm:$0xff] %v526
                  %v528 = vld [vmem:[%s434 + $0x170] sm:$0xff]
                  %529 = vst [vmem:[%s435 + $0x170] sm:$0xff] %v528
                  %v530 = vld [vmem:[%s434 + $0x178] sm:$0xff]
                  %531 = vst [vmem:[%s435 + $0x178] sm:$0xff] %v530
                  %v532 = vld [vmem:[%s434 + $0x180] sm:$0xff]
                  %533 = vst [vmem:[%s435 + $0x180] sm:$0xff] %v532
                  %v534 = vld [vmem:[%s434 + $0x188] sm:$0xff]
                  %535 = vst [vmem:[%s435 + $0x188] sm:$0xff] %v534
                  %v536 = vld [vmem:[%s434 + $0x190] sm:$0xff]
                  %537 = vst [vmem:[%s435 + $0x190] sm:$0xff] %v536
                  %v538 = vld [vmem:[%s434 + $0x198] sm:$0xff]
                  %539 = vst [vmem:[%s435 + $0x198] sm:$0xff] %v538
                  %v540 = vld [vmem:[%s434 + $0x1a0] sm:$0xff]
                  %541 = vst [vmem:[%s435 + $0x1a0] sm:$0xff] %v540
                  %v542 = vld [vmem:[%s434 + $0x1a8] sm:$0xff]
                  %543 = vst [vmem:[%s435 + $0x1a8] sm:$0xff] %v542
                  %v544 = vld [vmem:[%s434 + $0x1b0] sm:$0xff]
                  %545 = vst [vmem:[%s435 + $0x1b0] sm:$0xff] %v544
                  %v546 = vld [vmem:[%s434 + $0x1b8] sm:$0xff]
                  %547 = vst [vmem:[%s435 + $0x1b8] sm:$0xff] %v546
                  %v548 = vld [vmem:[%s434 + $0x1c0] sm:$0xff]
                  %549 = vst [vmem:[%s435 + $0x1c0] sm:$0xff] %v548
                  %v550 = vld [vmem:[%s434 + $0x1c8] sm:$0xff]
                  %551 = vst [vmem:[%s435 + $0x1c8] sm:$0xff] %v550
                  %v552 = vld [vmem:[%s434 + $0x1d0] sm:$0xff]
                  %553 = vst [vmem:[%s435 + $0x1d0] sm:$0xff] %v552
                  %v554 = vld [vmem:[%s434 + $0x1d8] sm:$0xff]
                  %555 = vst [vmem:[%s435 + $0x1d8] sm:$0xff] %v554
                  %v556 = vld [vmem:[%s434 + $0x1e0] sm:$0xff]
                  %557 = vst [vmem:[%s435 + $0x1e0] sm:$0xff] %v556
                  %v558 = vld [vmem:[%s434 + $0x1e8] sm:$0xff]
                  %559 = vst [vmem:[%s435 + $0x1e8] sm:$0xff] %v558
                  %v560 = vld [vmem:[%s434 + $0x1f0] sm:$0xff]
                  %561 = vst [vmem:[%s435 + $0x1f0] sm:$0xff] %v560
                  %v562 = vld [vmem:[%s434 + $0x1f8] sm:$0xff]
                  %563 = vst [vmem:[%s435 + $0x1f8] sm:$0xff] %v562
                  %v564 = vld [vmem:[%s434 + $0x200] sm:$0xff]
                  %565 = vst [vmem:[%s435 + $0x200] sm:$0xff] %v564
                  %v566 = vld [vmem:[%s434 + $0x208] sm:$0xff]
                  %567 = vst [vmem:[%s435 + $0x208] sm:$0xff] %v566
                  %v568 = vld [vmem:[%s434 + $0x210] sm:$0xff]
                  %569 = vst [vmem:[%s435 + $0x210] sm:$0xff] %v568
                  %v570 = vld [vmem:[%s434 + $0x218] sm:$0xff]
                  %571 = vst [vmem:[%s435 + $0x218] sm:$0xff] %v570
                  %v572 = vld [vmem:[%s434 + $0x220] sm:$0xff]
                  %573 = vst [vmem:[%s435 + $0x220] sm:$0xff] %v572
                  %v574 = vld [vmem:[%s434 + $0x228] sm:$0xff]
                  %575 = vst [vmem:[%s435 + $0x228] sm:$0xff] %v574
                  %v576 = vld [vmem:[%s434 + $0x230] sm:$0xff]
                  %577 = vst [vmem:[%s435 + $0x230] sm:$0xff] %v576
                  %v578 = vld [vmem:[%s434 + $0x238] sm:$0xff]
                  %579 = vst [vmem:[%s435 + $0x238] sm:$0xff] %v578
                  %v580 = vld [vmem:[%s434 + $0x240] sm:$0xff]
                  %581 = vst [vmem:[%s435 + $0x240] sm:$0xff] %v580
                  %v582 = vld [vmem:[%s434 + $0x248] sm:$0xff]
                  %583 = vst [vmem:[%s435 + $0x248] sm:$0xff] %v582
                  %v584 = vld [vmem:[%s434 + $0x4a0] sm:$0xff]
                  %585 = vst [vmem:[%s435 + $0x250] sm:$0xff] %v584
                  %v586 = vld [vmem:[%s434 + $0x4a8] sm:$0xff]
                  %587 = vst [vmem:[%s435 + $0x258] sm:$0xff] %v586
                  %v588 = vld [vmem:[%s434 + $0x4b0] sm:$0xff]
                  %589 = vst [vmem:[%s435 + $0x260] sm:$0xff] %v588
                  %v590 = vld [vmem:[%s434 + $0x4b8] sm:$0xff]
                  %591 = vst [vmem:[%s435 + $0x268] sm:$0xff] %v590
                  %v592 = vld [vmem:[%s434 + $0x4c0] sm:$0xff]
                  %593 = vst [vmem:[%s435 + $0x270] sm:$0xff] %v592
                  %v594 = vld [vmem:[%s434 + $0x4c8] sm:$0xff]
                  %595 = vst [vmem:[%s435 + $0x278] sm:$0xff] %v594
                  %v596 = vld [vmem:[%s434 + $0x4d0] sm:$0xff]
                  %597 = vst [vmem:[%s435 + $0x280] sm:$0xff] %v596
                  %v598 = vld [vmem:[%s434 + $0x4d8] sm:$0xff]
                  %599 = vst [vmem:[%s435 + $0x288] sm:$0xff] %v598
                  %v600 = vld [vmem:[%s434 + $0x4e0] sm:$0xff]
                  %601 = vst [vmem:[%s435 + $0x290] sm:$0xff] %v600
                  %v602 = vld [vmem:[%s434 + $0x4e8] sm:$0xff]
                  %603 = vst [vmem:[%s435 + $0x298] sm:$0xff] %v602
                  %v604 = vld [vmem:[%s434 + $0x4f0] sm:$0xff]
                  %605 = vst [vmem:[%s435 + $0x2a0] sm:$0xff] %v604
                  %v606 = vld [vmem:[%s434 + $0x4f8] sm:$0xff]
                  %607 = vst [vmem:[%s435 + $0x2a8] sm:$0xff] %v606
                  %v608 = vld [vmem:[%s434 + $0x500] sm:$0xff]
                  %609 = vst [vmem:[%s435 + $0x2b0] sm:$0xff] %v608
                  %v610 = vld [vmem:[%s434 + $0x508] sm:$0xff]
                  %611 = vst [vmem:[%s435 + $0x2b8] sm:$0xff] %v610
                  %v612 = vld [vmem:[%s434 + $0x510] sm:$0xff]
                  %613 = vst [vmem:[%s435 + $0x2c0] sm:$0xff] %v612
                  %v614 = vld [vmem:[%s434 + $0x518] sm:$0xff]
                  %615 = vst [vmem:[%s435 + $0x2c8] sm:$0xff] %v614
                  %v616 = vld [vmem:[%s434 + $0x520] sm:$0xff]
                  %617 = vst [vmem:[%s435 + $0x2d0] sm:$0xff] %v616
                  %v618 = vld [vmem:[%s434 + $0x528] sm:$0xff]
                  %619 = vst [vmem:[%s435 + $0x2d8] sm:$0xff] %v618
                  %v620 = vld [vmem:[%s434 + $0x530] sm:$0xff]
                  %621 = vst [vmem:[%s435 + $0x2e0] sm:$0xff] %v620
                  %v622 = vld [vmem:[%s434 + $0x538] sm:$0xff]
                  %623 = vst [vmem:[%s435 + $0x2e8] sm:$0xff] %v622
                  %v624 = vld [vmem:[%s434 + $0x540] sm:$0xff]
                  %625 = vst [vmem:[%s435 + $0x2f0] sm:$0xff] %v624
                  %v626 = vld [vmem:[%s434 + $0x548] sm:$0xff]
                  %627 = vst [vmem:[%s435 + $0x2f8] sm:$0xff] %v626
                  %v628 = vld [vmem:[%s434 + $0x550] sm:$0xff]
                  %629 = vst [vmem:[%s435 + $0x300] sm:$0xff] %v628
                  %v630 = vld [vmem:[%s434 + $0x558] sm:$0xff]
                  %631 = vst [vmem:[%s435 + $0x308] sm:$0xff] %v630
                  %v632 = vld [vmem:[%s434 + $0x560] sm:$0xff]
                  %633 = vst [vmem:[%s435 + $0x310] sm:$0xff] %v632
                  %v634 = vld [vmem:[%s434 + $0x568] sm:$0xff]
                  %635 = vst [vmem:[%s435 + $0x318] sm:$0xff] %v634
                  %v636 = vld [vmem:[%s434 + $0x570] sm:$0xff]
                  %637 = vst [vmem:[%s435 + $0x320] sm:$0xff] %v636
                  %v638 = vld [vmem:[%s434 + $0x578] sm:$0xff]
                  %639 = vst [vmem:[%s435 + $0x328] sm:$0xff] %v638
                  %v640 = vld [vmem:[%s434 + $0x580] sm:$0xff]
                  %641 = vst [vmem:[%s435 + $0x330] sm:$0xff] %v640
                  %v642 = vld [vmem:[%s434 + $0x588] sm:$0xff]
                  %643 = vst [vmem:[%s435 + $0x338] sm:$0xff] %v642
                  %v644 = vld [vmem:[%s434 + $0x590] sm:$0xff]
                  %645 = vst [vmem:[%s435 + $0x340] sm:$0xff] %v644
                  %v646 = vld [vmem:[%s434 + $0x598] sm:$0xff]
                  %647 = vst [vmem:[%s435 + $0x348] sm:$0xff] %v646
                  %v648 = vld [vmem:[%s434 + $0x5a0] sm:$0xff]
                  %649 = vst [vmem:[%s435 + $0x350] sm:$0xff] %v648
                  %v650 = vld [vmem:[%s434 + $0x5a8] sm:$0xff]
                  %651 = vst [vmem:[%s435 + $0x358] sm:$0xff] %v650
                  %v652 = vld [vmem:[%s434 + $0x5b0] sm:$0xff]
                  %653 = vst [vmem:[%s435 + $0x360] sm:$0xff] %v652
                  %v654 = vld [vmem:[%s434 + $0x5b8] sm:$0xff]
                  %655 = vst [vmem:[%s435 + $0x368] sm:$0xff] %v654
                  %v656 = vld [vmem:[%s434 + $0x5c0] sm:$0xff]
                  %657 = vst [vmem:[%s435 + $0x370] sm:$0xff] %v656
                  %v658 = vld [vmem:[%s434 + $0x5c8] sm:$0xff]
                  %659 = vst [vmem:[%s435 + $0x378] sm:$0xff] %v658
                  %v660 = vld [vmem:[%s434 + $0x5d0] sm:$0xff]
                  %661 = vst [vmem:[%s435 + $0x380] sm:$0xff] %v660
                  %v662 = vld [vmem:[%s434 + $0x5d8] sm:$0xff]
                  %663 = vst [vmem:[%s435 + $0x388] sm:$0xff] %v662
                  %v664 = vld [vmem:[%s434 + $0x5e0] sm:$0xff]
                  %665 = vst [vmem:[%s435 + $0x390] sm:$0xff] %v664
                  %v666 = vld [vmem:[%s434 + $0x5e8] sm:$0xff]
                  %667 = vst [vmem:[%s435 + $0x398] sm:$0xff] %v666
                  %v668 = vld [vmem:[%s434 + $0x5f0] sm:$0xff]
                  %669 = vst [vmem:[%s435 + $0x3a0] sm:$0xff] %v668
                  %v670 = vld [vmem:[%s434 + $0x5f8] sm:$0xff]
                  %671 = vst [vmem:[%s435 + $0x3a8] sm:$0xff] %v670
                  %v672 = vld [vmem:[%s434 + $0x600] sm:$0xff]
                  %673 = vst [vmem:[%s435 + $0x3b0] sm:$0xff] %v672
                  %v674 = vld [vmem:[%s434 + $0x608] sm:$0xff]
                  %675 = vst [vmem:[%s435 + $0x3b8] sm:$0xff] %v674
                  %v676 = vld [vmem:[%s434 + $0x610] sm:$0xff]
                  %677 = vst [vmem:[%s435 + $0x3c0] sm:$0xff] %v676
                  %v678 = vld [vmem:[%s434 + $0x618] sm:$0xff]
                  %679 = vst [vmem:[%s435 + $0x3c8] sm:$0xff] %v678
                  %v680 = vld [vmem:[%s434 + $0x620] sm:$0xff]
                  %681 = vst [vmem:[%s435 + $0x3d0] sm:$0xff] %v680
                  %v682 = vld [vmem:[%s434 + $0x628] sm:$0xff]
                  %683 = vst [vmem:[%s435 + $0x3d8] sm:$0xff] %v682
                  %v684 = vld [vmem:[%s434 + $0x630] sm:$0xff]
                  %685 = vst [vmem:[%s435 + $0x3e0] sm:$0xff] %v684
                  %v686 = vld [vmem:[%s434 + $0x638] sm:$0xff]
                  %687 = vst [vmem:[%s435 + $0x3e8] sm:$0xff] %v686
                  %v688 = vld [vmem:[%s434 + $0x640] sm:$0xff]
                  %689 = vst [vmem:[%s435 + $0x3f0] sm:$0xff] %v688
                  %v690 = vld [vmem:[%s434 + $0x648] sm:$0xff]
                  %691 = vst [vmem:[%s435 + $0x3f8] sm:$0xff] %v690
                  %v692 = vld [vmem:[%s434 + $0x650] sm:$0xff]
                  %693 = vst [vmem:[%s435 + $0x400] sm:$0xff] %v692
                  %v694 = vld [vmem:[%s434 + $0x658] sm:$0xff]
                  %695 = vst [vmem:[%s435 + $0x408] sm:$0xff] %v694
                  %v696 = vld [vmem:[%s434 + $0x660] sm:$0xff]
                  %697 = vst [vmem:[%s435 + $0x410] sm:$0xff] %v696
                  %v698 = vld [vmem:[%s434 + $0x668] sm:$0xff]
                  %699 = vst [vmem:[%s435 + $0x418] sm:$0xff] %v698
                  %v700 = vld [vmem:[%s434 + $0x670] sm:$0xff]
                  %701 = vst [vmem:[%s435 + $0x420] sm:$0xff] %v700
                  %v702 = vld [vmem:[%s434 + $0x678] sm:$0xff]
                  %703 = vst [vmem:[%s435 + $0x428] sm:$0xff] %v702
                  %v704 = vld [vmem:[%s434 + $0x680] sm:$0xff]
                  %705 = vst [vmem:[%s435 + $0x430] sm:$0xff] %v704
                  %v706 = vld [vmem:[%s434 + $0x688] sm:$0xff]
                  %707 = vst [vmem:[%s435 + $0x438] sm:$0xff] %v706
                  %v708 = vld [vmem:[%s434 + $0x690] sm:$0xff]
                  %709 = vst [vmem:[%s435 + $0x440] sm:$0xff] %v708
                  %v710 = vld [vmem:[%s434 + $0x698] sm:$0xff]
                  %711 = vst [vmem:[%s435 + $0x448] sm:$0xff] %v710
                  %v712 = vld [vmem:[%s434 + $0x6a0] sm:$0xff]
                  %713 = vst [vmem:[%s435 + $0x450] sm:$0xff] %v712
                  %v714 = vld [vmem:[%s434 + $0x6a8] sm:$0xff]
                  %715 = vst [vmem:[%s435 + $0x458] sm:$0xff] %v714
                  %v716 = vld [vmem:[%s434 + $0x6b0] sm:$0xff]
                  %717 = vst [vmem:[%s435 + $0x460] sm:$0xff] %v716
                  %v718 = vld [vmem:[%s434 + $0x6b8] sm:$0xff]
                  %719 = vst [vmem:[%s435 + $0x468] sm:$0xff] %v718
                  %v720 = vld [vmem:[%s434 + $0x6c0] sm:$0xff]
                  %721 = vst [vmem:[%s435 + $0x470] sm:$0xff] %v720
                  %v722 = vld [vmem:[%s434 + $0x6c8] sm:$0xff]
                  %723 = vst [vmem:[%s435 + $0x478] sm:$0xff] %v722
                  %v724 = vld [vmem:[%s434 + $0x6d0] sm:$0xff]
                  %725 = vst [vmem:[%s435 + $0x480] sm:$0xff] %v724
                  %v726 = vld [vmem:[%s434 + $0x6d8] sm:$0xff]
                  %727 = vst [vmem:[%s435 + $0x488] sm:$0xff] %v726
                  %v728 = vld [vmem:[%s434 + $0x6e0] sm:$0xff]
                  %729 = vst [vmem:[%s435 + $0x490] sm:$0xff] %v728
                  %v730 = vld [vmem:[%s434 + $0x6e8] sm:$0xff]
                  %731 = vst [vmem:[%s435 + $0x498] sm:$0xff] %v730
                $region48: #{module_test2_forward.1} parent=42 // loop_footer
                  %s433 = sadd.s32 1, %s429
                $region49: #{module_test2_forward.1} parent=42 // loop_footer_branch
                  %428 = sbr.rel target = $region45
                $region50: #{module_test2_forward.1} parent=42 // loop_exit
                  _
              $region43: #{module_test2_forward.1} parent=27 // pred_fallthru
                _
              // Predicated region
              $region51: #{module_test2_forward.1} parent=27 // pred_check
                _
              $region52: #{module_test2_forward.1} parent=27 // pred_check_branch
                %733 = sbr.rel target = $region54
              $region53: #{module_test2_forward.1} parent=27 // pred_region
                _
              $region54: #{module_test2_forward.1} parent=27 // pred_fallthru
                _
            $region28: #{module_test2_forward.1} parent=23 // pred_fallthru
              _
            // Predicated region
            $region29: #{module_test2_forward.1} parent=23 // pred_check
              _
            $region30: #{module_test2_forward.1} parent=23 // pred_check_branch
              %120 = sbr.rel target = $region32
            $region31: #{module_test2_forward.1} parent=23 // pred_region
              loop: start=0, step=1, limit=1
              $region33: #{module_test2_forward.1} parent=31 // loop_pre_header
                _
              $region34: #{module_test2_forward.1} parent=31 // loop_header
                %s123 = sphi 0, %s127
                %p124 = scmp.ge.s32.totalorder %s123, 1
                %s128 = sphi %s114, %s114
                %s129 = sphi %s111, %s111
              $region35: #{module_test2_forward.1} parent=31 // loop_header_branch
                %126 = sbr.rel (%p124) target = $region39
              $region36: #{module_test2_forward.1} parent=31 // loop_body
                %v130 = vld [vmem:[%s128] sm:$0xff]
                %131 = vst [vmem:[%s129] sm:$0xff] %v130
                %v132 = vld [vmem:[%s128 + $0x8] sm:$0xff]
                %133 = vst [vmem:[%s129 + $0x8] sm:$0xff] %v132
                %v134 = vld [vmem:[%s128 + $0x10] sm:$0xff]
                %135 = vst [vmem:[%s129 + $0x10] sm:$0xff] %v134
                %v136 = vld [vmem:[%s128 + $0x18] sm:$0xff]
                %137 = vst [vmem:[%s129 + $0x18] sm:$0xff] %v136
                %v138 = vld [vmem:[%s128 + $0x20] sm:$0xff]
                %139 = vst [vmem:[%s129 + $0x20] sm:$0xff] %v138
                %v140 = vld [vmem:[%s128 + $0x28] sm:$0xff]
                %141 = vst [vmem:[%s129 + $0x28] sm:$0xff] %v140
                %v142 = vld [vmem:[%s128 + $0x30] sm:$0xff]
                %143 = vst [vmem:[%s129 + $0x30] sm:$0xff] %v142
                %v144 = vld [vmem:[%s128 + $0x38] sm:$0xff]
                %145 = vst [vmem:[%s129 + $0x38] sm:$0xff] %v144
                %v146 = vld [vmem:[%s128 + $0x40] sm:$0xff]
                %147 = vst [vmem:[%s129 + $0x40] sm:$0xff] %v146
                %v148 = vld [vmem:[%s128 + $0x48] sm:$0xff]
                %149 = vst [vmem:[%s129 + $0x48] sm:$0xff] %v148
                %v150 = vld [vmem:[%s128 + $0x50] sm:$0xff]
                %151 = vst [vmem:[%s129 + $0x50] sm:$0xff] %v150
                %v152 = vld [vmem:[%s128 + $0x58] sm:$0xff]
                %153 = vst [vmem:[%s129 + $0x58] sm:$0xff] %v152
                %v154 = vld [vmem:[%s128 + $0x60] sm:$0xff]
                %155 = vst [vmem:[%s129 + $0x60] sm:$0xff] %v154
                %v156 = vld [vmem:[%s128 + $0x68] sm:$0xff]
                %157 = vst [vmem:[%s129 + $0x68] sm:$0xff] %v156
                %v158 = vld [vmem:[%s128 + $0x70] sm:$0xff]
                %159 = vst [vmem:[%s129 + $0x70] sm:$0xff] %v158
                %v160 = vld [vmem:[%s128 + $0x78] sm:$0xff]
                %161 = vst [vmem:[%s129 + $0x78] sm:$0xff] %v160
                %v162 = vld [vmem:[%s128 + $0x80] sm:$0xff]
                %163 = vst [vmem:[%s129 + $0x80] sm:$0xff] %v162
                %v164 = vld [vmem:[%s128 + $0x88] sm:$0xff]
                %165 = vst [vmem:[%s129 + $0x88] sm:$0xff] %v164
                %v166 = vld [vmem:[%s128 + $0x90] sm:$0xff]
                %167 = vst [vmem:[%s129 + $0x90] sm:$0xff] %v166
                %v168 = vld [vmem:[%s128 + $0x98] sm:$0xff]
                %169 = vst [vmem:[%s129 + $0x98] sm:$0xff] %v168
                %v170 = vld [vmem:[%s128 + $0xa0] sm:$0xff]
                %171 = vst [vmem:[%s129 + $0xa0] sm:$0xff] %v170
                %v172 = vld [vmem:[%s128 + $0xa8] sm:$0xff]
                %173 = vst [vmem:[%s129 + $0xa8] sm:$0xff] %v172
                %v174 = vld [vmem:[%s128 + $0xb0] sm:$0xff]
                %175 = vst [vmem:[%s129 + $0xb0] sm:$0xff] %v174
                %v176 = vld [vmem:[%s128 + $0xb8] sm:$0xff]
                %177 = vst [vmem:[%s129 + $0xb8] sm:$0xff] %v176
                %v178 = vld [vmem:[%s128 + $0xc0] sm:$0xff]
                %179 = vst [vmem:[%s129 + $0xc0] sm:$0xff] %v178
                %v180 = vld [vmem:[%s128 + $0xc8] sm:$0xff]
                %181 = vst [vmem:[%s129 + $0xc8] sm:$0xff] %v180
                %v182 = vld [vmem:[%s128 + $0xd0] sm:$0xff]
                %183 = vst [vmem:[%s129 + $0xd0] sm:$0xff] %v182
                %v184 = vld [vmem:[%s128 + $0xd8] sm:$0xff]
                %185 = vst [vmem:[%s129 + $0xd8] sm:$0xff] %v184
                %v186 = vld [vmem:[%s128 + $0xe0] sm:$0xff]
                %187 = vst [vmem:[%s129 + $0xe0] sm:$0xff] %v186
                %v188 = vld [vmem:[%s128 + $0xe8] sm:$0xff]
                %189 = vst [vmem:[%s129 + $0xe8] sm:$0xff] %v188
                %v190 = vld [vmem:[%s128 + $0xf0] sm:$0xff]
                %191 = vst [vmem:[%s129 + $0xf0] sm:$0xff] %v190
                %v192 = vld [vmem:[%s128 + $0xf8] sm:$0xff]
                %193 = vst [vmem:[%s129 + $0xf8] sm:$0xff] %v192
                %v194 = vld [vmem:[%s128 + $0x100] sm:$0xff]
                %195 = vst [vmem:[%s129 + $0x100] sm:$0xff] %v194
                %v196 = vld [vmem:[%s128 + $0x108] sm:$0xff]
                %197 = vst [vmem:[%s129 + $0x108] sm:$0xff] %v196
                %v198 = vld [vmem:[%s128 + $0x110] sm:$0xff]
                %199 = vst [vmem:[%s129 + $0x110] sm:$0xff] %v198
                %v200 = vld [vmem:[%s128 + $0x118] sm:$0xff]
                %201 = vst [vmem:[%s129 + $0x118] sm:$0xff] %v200
                %v202 = vld [vmem:[%s128 + $0x120] sm:$0xff]
                %203 = vst [vmem:[%s129 + $0x120] sm:$0xff] %v202
                %v204 = vld [vmem:[%s128 + $0x128] sm:$0xff]
                %205 = vst [vmem:[%s129 + $0x128] sm:$0xff] %v204
                %v206 = vld [vmem:[%s128 + $0x130] sm:$0xff]
                %207 = vst [vmem:[%s129 + $0x130] sm:$0xff] %v206
                %v208 = vld [vmem:[%s128 + $0x138] sm:$0xff]
                %209 = vst [vmem:[%s129 + $0x138] sm:$0xff] %v208
                %v210 = vld [vmem:[%s128 + $0x140] sm:$0xff]
                %211 = vst [vmem:[%s129 + $0x140] sm:$0xff] %v210
                %v212 = vld [vmem:[%s128 + $0x148] sm:$0xff]
                %213 = vst [vmem:[%s129 + $0x148] sm:$0xff] %v212
                %v214 = vld [vmem:[%s128 + $0x150] sm:$0xff]
                %215 = vst [vmem:[%s129 + $0x150] sm:$0xff] %v214
                %v216 = vld [vmem:[%s128 + $0x158] sm:$0xff]
                %217 = vst [vmem:[%s129 + $0x158] sm:$0xff] %v216
                %v218 = vld [vmem:[%s128 + $0x160] sm:$0xff]
                %219 = vst [vmem:[%s129 + $0x160] sm:$0xff] %v218
                %v220 = vld [vmem:[%s128 + $0x168] sm:$0xff]
                %221 = vst [vmem:[%s129 + $0x168] sm:$0xff] %v220
                %v222 = vld [vmem:[%s128 + $0x170] sm:$0xff]
                %223 = vst [vmem:[%s129 + $0x170] sm:$0xff] %v222
                %v224 = vld [vmem:[%s128 + $0x178] sm:$0xff]
                %225 = vst [vmem:[%s129 + $0x178] sm:$0xff] %v224
                %v226 = vld [vmem:[%s128 + $0x180] sm:$0xff]
                %227 = vst [vmem:[%s129 + $0x180] sm:$0xff] %v226
                %v228 = vld [vmem:[%s128 + $0x188] sm:$0xff]
                %229 = vst [vmem:[%s129 + $0x188] sm:$0xff] %v228
                %v230 = vld [vmem:[%s128 + $0x190] sm:$0xff]
                %231 = vst [vmem:[%s129 + $0x190] sm:$0xff] %v230
                %v232 = vld [vmem:[%s128 + $0x198] sm:$0xff]
                %233 = vst [vmem:[%s129 + $0x198] sm:$0xff] %v232
                %v234 = vld [vmem:[%s128 + $0x1a0] sm:$0xff]
                %235 = vst [vmem:[%s129 + $0x1a0] sm:$0xff] %v234
                %v236 = vld [vmem:[%s128 + $0x1a8] sm:$0xff]
                %237 = vst [vmem:[%s129 + $0x1a8] sm:$0xff] %v236
                %v238 = vld [vmem:[%s128 + $0x1b0] sm:$0xff]
                %239 = vst [vmem:[%s129 + $0x1b0] sm:$0xff] %v238
                %v240 = vld [vmem:[%s128 + $0x1b8] sm:$0xff]
                %241 = vst [vmem:[%s129 + $0x1b8] sm:$0xff] %v240
                %v242 = vld [vmem:[%s128 + $0x1c0] sm:$0xff]
                %243 = vst [vmem:[%s129 + $0x1c0] sm:$0xff] %v242
                %v244 = vld [vmem:[%s128 + $0x1c8] sm:$0xff]
                %245 = vst [vmem:[%s129 + $0x1c8] sm:$0xff] %v244
                %v246 = vld [vmem:[%s128 + $0x1d0] sm:$0xff]
                %247 = vst [vmem:[%s129 + $0x1d0] sm:$0xff] %v246
                %v248 = vld [vmem:[%s128 + $0x1d8] sm:$0xff]
                %249 = vst [vmem:[%s129 + $0x1d8] sm:$0xff] %v248
                %v250 = vld [vmem:[%s128 + $0x1e0] sm:$0xff]
                %251 = vst [vmem:[%s129 + $0x1e0] sm:$0xff] %v250
                %v252 = vld [vmem:[%s128 + $0x1e8] sm:$0xff]
                %253 = vst [vmem:[%s129 + $0x1e8] sm:$0xff] %v252
                %v254 = vld [vmem:[%s128 + $0x1f0] sm:$0xff]
                %255 = vst [vmem:[%s129 + $0x1f0] sm:$0xff] %v254
                %v256 = vld [vmem:[%s128 + $0x1f8] sm:$0xff]
                %257 = vst [vmem:[%s129 + $0x1f8] sm:$0xff] %v256
                %v258 = vld [vmem:[%s128 + $0x200] sm:$0xff]
                %259 = vst [vmem:[%s129 + $0x200] sm:$0xff] %v258
                %v260 = vld [vmem:[%s128 + $0x208] sm:$0xff]
                %261 = vst [vmem:[%s129 + $0x208] sm:$0xff] %v260
                %v262 = vld [vmem:[%s128 + $0x210] sm:$0xff]
                %263 = vst [vmem:[%s129 + $0x210] sm:$0xff] %v262
                %v264 = vld [vmem:[%s128 + $0x218] sm:$0xff]
                %265 = vst [vmem:[%s129 + $0x218] sm:$0xff] %v264
                %v266 = vld [vmem:[%s128 + $0x220] sm:$0xff]
                %267 = vst [vmem:[%s129 + $0x220] sm:$0xff] %v266
                %v268 = vld [vmem:[%s128 + $0x228] sm:$0xff]
                %269 = vst [vmem:[%s129 + $0x228] sm:$0xff] %v268
                %v270 = vld [vmem:[%s128 + $0x230] sm:$0xff]
                %271 = vst [vmem:[%s129 + $0x230] sm:$0xff] %v270
                %v272 = vld [vmem:[%s128 + $0x238] sm:$0xff]
                %273 = vst [vmem:[%s129 + $0x238] sm:$0xff] %v272
                %v274 = vld [vmem:[%s128 + $0x240] sm:$0xff]
                %275 = vst [vmem:[%s129 + $0x240] sm:$0xff] %v274
                %v276 = vld [vmem:[%s128 + $0x248] sm:$0xff]
                %277 = vst [vmem:[%s129 + $0x248] sm:$0xff] %v276
                %v278 = vld [vmem:[%s128 + $0x4a0] sm:$0xff]
                %279 = vst [vmem:[%s129 + $0x250] sm:$0xff] %v278
                %v280 = vld [vmem:[%s128 + $0x4a8] sm:$0xff]
                %281 = vst [vmem:[%s129 + $0x258] sm:$0xff] %v280
                %v282 = vld [vmem:[%s128 + $0x4b0] sm:$0xff]
                %283 = vst [vmem:[%s129 + $0x260] sm:$0xff] %v282
                %v284 = vld [vmem:[%s128 + $0x4b8] sm:$0xff]
                %285 = vst [vmem:[%s129 + $0x268] sm:$0xff] %v284
                %v286 = vld [vmem:[%s128 + $0x4c0] sm:$0xff]
                %287 = vst [vmem:[%s129 + $0x270] sm:$0xff] %v286
                %v288 = vld [vmem:[%s128 + $0x4c8] sm:$0xff]
                %289 = vst [vmem:[%s129 + $0x278] sm:$0xff] %v288
                %v290 = vld [vmem:[%s128 + $0x4d0] sm:$0xff]
                %291 = vst [vmem:[%s129 + $0x280] sm:$0xff] %v290
                %v292 = vld [vmem:[%s128 + $0x4d8] sm:$0xff]
                %293 = vst [vmem:[%s129 + $0x288] sm:$0xff] %v292
                %v294 = vld [vmem:[%s128 + $0x4e0] sm:$0xff]
                %295 = vst [vmem:[%s129 + $0x290] sm:$0xff] %v294
                %v296 = vld [vmem:[%s128 + $0x4e8] sm:$0xff]
                %297 = vst [vmem:[%s129 + $0x298] sm:$0xff] %v296
                %v298 = vld [vmem:[%s128 + $0x4f0] sm:$0xff]
                %299 = vst [vmem:[%s129 + $0x2a0] sm:$0xff] %v298
                %v300 = vld [vmem:[%s128 + $0x4f8] sm:$0xff]
                %301 = vst [vmem:[%s129 + $0x2a8] sm:$0xff] %v300
                %v302 = vld [vmem:[%s128 + $0x500] sm:$0xff]
                %303 = vst [vmem:[%s129 + $0x2b0] sm:$0xff] %v302
                %v304 = vld [vmem:[%s128 + $0x508] sm:$0xff]
                %305 = vst [vmem:[%s129 + $0x2b8] sm:$0xff] %v304
                %v306 = vld [vmem:[%s128 + $0x510] sm:$0xff]
                %307 = vst [vmem:[%s129 + $0x2c0] sm:$0xff] %v306
                %v308 = vld [vmem:[%s128 + $0x518] sm:$0xff]
                %309 = vst [vmem:[%s129 + $0x2c8] sm:$0xff] %v308
                %v310 = vld [vmem:[%s128 + $0x520] sm:$0xff]
                %311 = vst [vmem:[%s129 + $0x2d0] sm:$0xff] %v310
                %v312 = vld [vmem:[%s128 + $0x528] sm:$0xff]
                %313 = vst [vmem:[%s129 + $0x2d8] sm:$0xff] %v312
                %v314 = vld [vmem:[%s128 + $0x530] sm:$0xff]
                %315 = vst [vmem:[%s129 + $0x2e0] sm:$0xff] %v314
                %v316 = vld [vmem:[%s128 + $0x538] sm:$0xff]
                %317 = vst [vmem:[%s129 + $0x2e8] sm:$0xff] %v316
                %v318 = vld [vmem:[%s128 + $0x540] sm:$0xff]
                %319 = vst [vmem:[%s129 + $0x2f0] sm:$0xff] %v318
                %v320 = vld [vmem:[%s128 + $0x548] sm:$0xff]
                %321 = vst [vmem:[%s129 + $0x2f8] sm:$0xff] %v320
                %v322 = vld [vmem:[%s128 + $0x550] sm:$0xff]
                %323 = vst [vmem:[%s129 + $0x300] sm:$0xff] %v322
                %v324 = vld [vmem:[%s128 + $0x558] sm:$0xff]
                %325 = vst [vmem:[%s129 + $0x308] sm:$0xff] %v324
                %v326 = vld [vmem:[%s128 + $0x560] sm:$0xff]
                %327 = vst [vmem:[%s129 + $0x310] sm:$0xff] %v326
                %v328 = vld [vmem:[%s128 + $0x568] sm:$0xff]
                %329 = vst [vmem:[%s129 + $0x318] sm:$0xff] %v328
                %v330 = vld [vmem:[%s128 + $0x570] sm:$0xff]
                %331 = vst [vmem:[%s129 + $0x320] sm:$0xff] %v330
                %v332 = vld [vmem:[%s128 + $0x578] sm:$0xff]
                %333 = vst [vmem:[%s129 + $0x328] sm:$0xff] %v332
                %v334 = vld [vmem:[%s128 + $0x580] sm:$0xff]
                %335 = vst [vmem:[%s129 + $0x330] sm:$0xff] %v334
                %v336 = vld [vmem:[%s128 + $0x588] sm:$0xff]
                %337 = vst [vmem:[%s129 + $0x338] sm:$0xff] %v336
                %v338 = vld [vmem:[%s128 + $0x590] sm:$0xff]
                %339 = vst [vmem:[%s129 + $0x340] sm:$0xff] %v338
                %v340 = vld [vmem:[%s128 + $0x598] sm:$0xff]
                %341 = vst [vmem:[%s129 + $0x348] sm:$0xff] %v340
                %v342 = vld [vmem:[%s128 + $0x5a0] sm:$0xff]
                %343 = vst [vmem:[%s129 + $0x350] sm:$0xff] %v342
                %v344 = vld [vmem:[%s128 + $0x5a8] sm:$0xff]
                %345 = vst [vmem:[%s129 + $0x358] sm:$0xff] %v344
                %v346 = vld [vmem:[%s128 + $0x5b0] sm:$0xff]
                %347 = vst [vmem:[%s129 + $0x360] sm:$0xff] %v346
                %v348 = vld [vmem:[%s128 + $0x5b8] sm:$0xff]
                %349 = vst [vmem:[%s129 + $0x368] sm:$0xff] %v348
                %v350 = vld [vmem:[%s128 + $0x5c0] sm:$0xff]
                %351 = vst [vmem:[%s129 + $0x370] sm:$0xff] %v350
                %v352 = vld [vmem:[%s128 + $0x5c8] sm:$0xff]
                %353 = vst [vmem:[%s129 + $0x378] sm:$0xff] %v352
                %v354 = vld [vmem:[%s128 + $0x5d0] sm:$0xff]
                %355 = vst [vmem:[%s129 + $0x380] sm:$0xff] %v354
                %v356 = vld [vmem:[%s128 + $0x5d8] sm:$0xff]
                %357 = vst [vmem:[%s129 + $0x388] sm:$0xff] %v356
                %v358 = vld [vmem:[%s128 + $0x5e0] sm:$0xff]
                %359 = vst [vmem:[%s129 + $0x390] sm:$0xff] %v358
                %v360 = vld [vmem:[%s128 + $0x5e8] sm:$0xff]
                %361 = vst [vmem:[%s129 + $0x398] sm:$0xff] %v360
                %v362 = vld [vmem:[%s128 + $0x5f0] sm:$0xff]
                %363 = vst [vmem:[%s129 + $0x3a0] sm:$0xff] %v362
                %v364 = vld [vmem:[%s128 + $0x5f8] sm:$0xff]
                %365 = vst [vmem:[%s129 + $0x3a8] sm:$0xff] %v364
                %v366 = vld [vmem:[%s128 + $0x600] sm:$0xff]
                %367 = vst [vmem:[%s129 + $0x3b0] sm:$0xff] %v366
                %v368 = vld [vmem:[%s128 + $0x608] sm:$0xff]
                %369 = vst [vmem:[%s129 + $0x3b8] sm:$0xff] %v368
                %v370 = vld [vmem:[%s128 + $0x610] sm:$0xff]
                %371 = vst [vmem:[%s129 + $0x3c0] sm:$0xff] %v370
                %v372 = vld [vmem:[%s128 + $0x618] sm:$0xff]
                %373 = vst [vmem:[%s129 + $0x3c8] sm:$0xff] %v372
                %v374 = vld [vmem:[%s128 + $0x620] sm:$0xff]
                %375 = vst [vmem:[%s129 + $0x3d0] sm:$0xff] %v374
                %v376 = vld [vmem:[%s128 + $0x628] sm:$0xff]
                %377 = vst [vmem:[%s129 + $0x3d8] sm:$0xff] %v376
                %v378 = vld [vmem:[%s128 + $0x630] sm:$0xff]
                %379 = vst [vmem:[%s129 + $0x3e0] sm:$0xff] %v378
                %v380 = vld [vmem:[%s128 + $0x638] sm:$0xff]
                %381 = vst [vmem:[%s129 + $0x3e8] sm:$0xff] %v380
                %v382 = vld [vmem:[%s128 + $0x640] sm:$0xff]
                %383 = vst [vmem:[%s129 + $0x3f0] sm:$0xff] %v382
                %v384 = vld [vmem:[%s128 + $0x648] sm:$0xff]
                %385 = vst [vmem:[%s129 + $0x3f8] sm:$0xff] %v384
                %v386 = vld [vmem:[%s128 + $0x650] sm:$0xff]
                %387 = vst [vmem:[%s129 + $0x400] sm:$0xff] %v386
                %v388 = vld [vmem:[%s128 + $0x658] sm:$0xff]
                %389 = vst [vmem:[%s129 + $0x408] sm:$0xff] %v388
                %v390 = vld [vmem:[%s128 + $0x660] sm:$0xff]
                %391 = vst [vmem:[%s129 + $0x410] sm:$0xff] %v390
                %v392 = vld [vmem:[%s128 + $0x668] sm:$0xff]
                %393 = vst [vmem:[%s129 + $0x418] sm:$0xff] %v392
                %v394 = vld [vmem:[%s128 + $0x670] sm:$0xff]
                %395 = vst [vmem:[%s129 + $0x420] sm:$0xff] %v394
                %v396 = vld [vmem:[%s128 + $0x678] sm:$0xff]
                %397 = vst [vmem:[%s129 + $0x428] sm:$0xff] %v396
                %v398 = vld [vmem:[%s128 + $0x680] sm:$0xff]
                %399 = vst [vmem:[%s129 + $0x430] sm:$0xff] %v398
                %v400 = vld [vmem:[%s128 + $0x688] sm:$0xff]
                %401 = vst [vmem:[%s129 + $0x438] sm:$0xff] %v400
                %v402 = vld [vmem:[%s128 + $0x690] sm:$0xff]
                %403 = vst [vmem:[%s129 + $0x440] sm:$0xff] %v402
                %v404 = vld [vmem:[%s128 + $0x698] sm:$0xff]
                %405 = vst [vmem:[%s129 + $0x448] sm:$0xff] %v404
                %v406 = vld [vmem:[%s128 + $0x6a0] sm:$0xff]
                %407 = vst [vmem:[%s129 + $0x450] sm:$0xff] %v406
                %v408 = vld [vmem:[%s128 + $0x6a8] sm:$0xff]
                %409 = vst [vmem:[%s129 + $0x458] sm:$0xff] %v408
                %v410 = vld [vmem:[%s128 + $0x6b0] sm:$0xff]
                %411 = vst [vmem:[%s129 + $0x460] sm:$0xff] %v410
                %v412 = vld [vmem:[%s128 + $0x6b8] sm:$0xff]
                %413 = vst [vmem:[%s129 + $0x468] sm:$0xff] %v412
                %v414 = vld [vmem:[%s128 + $0x6c0] sm:$0xff]
                %415 = vst [vmem:[%s129 + $0x470] sm:$0xff] %v414
                %v416 = vld [vmem:[%s128 + $0x6c8] sm:$0xff]
                %417 = vst [vmem:[%s129 + $0x478] sm:$0xff] %v416
                %v418 = vld [vmem:[%s128 + $0x6d0] sm:$0xff]
                %419 = vst [vmem:[%s129 + $0x480] sm:$0xff] %v418
                %v420 = vld [vmem:[%s128 + $0x6d8] sm:$0xff]
                %421 = vst [vmem:[%s129 + $0x488] sm:$0xff] %v420
                %v422 = vld [vmem:[%s128 + $0x6e0] sm:$0xff]
                %423 = vst [vmem:[%s129 + $0x490] sm:$0xff] %v422
                %v424 = vld [vmem:[%s128 + $0x6e8] sm:$0xff]
                %425 = vst [vmem:[%s129 + $0x498] sm:$0xff] %v424
              $region37: #{module_test2_forward.1} parent=31 // loop_footer
                %s127 = sadd.s32 1, %s123
              $region38: #{module_test2_forward.1} parent=31 // loop_footer_branch
                %122 = sbr.rel target = $region34
              $region39: #{module_test2_forward.1} parent=31 // loop_exit
                _
            $region32: #{module_test2_forward.1} parent=23 // pred_fallthru
              _
          $region24: #{module_test2_forward.1} parent=19 // pred_fallthru
            _
          %734 = vnop
        $region20: #{module_test2_forward.1} parent=15 // pred_fallthru
          _
        // Predicated region
        $region55: #{module_test2_forward.1} parent=15 // pred_check
          %p735 = pneg %p54
        $region56: #{module_test2_forward.1} parent=15 // pred_check_branch
          %737 = sbr.rel (%p735) target = $region58
        $region57: #{module_test2_forward.1} parent=15 // pred_region
          %p738 = scmp.lt.s32.totalorder %s8, 1
          %s739 = scalar_select %p738, %s8, 1
          %s740 = smul.addr %s739, 74
          %s741 = smul.addr %s740, 8
          %s742 = scalar_lea.vmem %s1, %s741
        $region58: #{module_test2_forward.1} parent=15 // pred_fallthru
          _
      $region16: #{module_test2_forward.1} parent=5 // pred_fallthru
        _
      %p743 = scmp.le.s32.totalorder 1, %s8
      %p744 = scmp.lt.s32.totalorder %s8, 3
      %p745 = pnand %p743, %p744
      %p746 = pneg %p745
      // Predicated region
      $region59: #{module_test2_forward.1} parent=5 // pred_check
        _
      $region60: #{module_test2_forward.1} parent=5 // pred_check_branch
        %748 = sbr.rel (%p745) target = $region62
      $region61: #{module_test2_forward.1} parent=5 // pred_region
        %s749 = ssub.s32 %s8, 1
        %s750 = sand.u32 %s21, 1
        %s751 = sand.u32 %s21, 1
        %s752 = smul.addr %s751, 1184
        %s753 = scalar_lea.vmem [#allocation2], %s752
        // Predicated region
        $region63: #{module_test2_forward.1} parent=61 // pred_check
          %p754 = pneg %p34
        $region64: #{module_test2_forward.1} parent=61 // pred_check_branch
          %756 = sbr.rel (%p754) target = $region66
        $region65: #{module_test2_forward.1} parent=61 // pred_region
          _
        $region66: #{module_test2_forward.1} parent=61 // pred_fallthru
          _
        %s757 = sand.u32 %s21, 1
        %s758 = sand.u32 %s21, 1
        %s759 = smul.addr %s758, 1184
        %s760 = scalar_lea.vmem [#allocation2], %s759
        %p761 = pneg %p34
        %p762 = pneg %p31
        %p763 = scmp.lt.s32.totalorder %s13, 1
        %s764 = scalar_select %p763, %s13, 1
        %s765 = smul.addr %s764, 74
        %s766 = smul.addr %s765, 8
        %s767 = scalar_lea.vmem %s1, %s766
        %p768 = pneg %p60
        %p769 = pneg %p57
        %p770 = pneg %p86
        %p771 = pneg %p83
        %p772 = scmp.lt.s32.totalorder %s13, 1
        %s773 = scalar_select %p772, %s13, 1
        %s774 = smul.addr %s773, 2
        %s775 = scalar_lea.vmem %s2, %s774
        %p776 = scmp.lt.s32.totalorder %s13, 1
        %s777 = scalar_select %p776, %s13, 1
        %s778 = smul.addr %s777, 74
        %s779 = smul.addr %s778, 8
        %s780 = scalar_lea.vmem %s1, %s779
        %p781 = scmp.lt.s32.totalorder %s13, 1
        %s782 = scalar_select %p781, %s13, 1
        %s783 = smul.addr %s782, 2
        %s784 = scalar_lea.vmem %s2, %s783
        %v785 = vld [vmem:[%s753] sm:$0xff]
        %v786 = vld [vmem:[%s753 + $0x8] sm:$0xff]
        %v787 = vld [vmem:[%s753 + $0x10] sm:$0xff]
        %v788 = vld [vmem:[%s753 + $0x18] sm:$0xff]
        %v789 = vld [vmem:[%s753 + $0x20] sm:$0xff]
        %v790 = vld [vmem:[%s753 + $0x28] sm:$0xff]
        %v791 = vld [vmem:[%s753 + $0x30] sm:$0xff]
        %v792 = vld [vmem:[%s753 + $0x38] sm:$0xff]
        %v793 = vld [vmem:[%s753 + $0x40] sm:$0xff]
        %v794 = vld [vmem:[%s753 + $0x48] sm:$0xff]
        %v795 = vld [vmem:[%s753 + $0x50] sm:$0xff]
        %v796 = vld [vmem:[%s753 + $0x58] sm:$0xff]
        %v797 = vld [vmem:[%s753 + $0x60] sm:$0xff]
        %v798 = vld [vmem:[%s753 + $0x68] sm:$0xff]
        %v799 = vld [vmem:[%s753 + $0x70] sm:$0xff]
        %v800 = vld [vmem:[%s753 + $0x78] sm:$0xff]
        %v801 = vld [vmem:[%s753 + $0x80] sm:$0xff]
        %v802 = vld [vmem:[%s753 + $0x88] sm:$0xff]
        %v803 = vld [vmem:[%s753 + $0x90] sm:$0xff]
        %v804 = vld [vmem:[%s753 + $0x98] sm:$0xff]
        %v805 = vld [vmem:[%s753 + $0xa0] sm:$0xff]
        %v806 = vld [vmem:[%s753 + $0xa8] sm:$0xff]
        %v807 = vld [vmem:[%s753 + $0xb0] sm:$0xff]
        %v808 = vld [vmem:[%s753 + $0xb8] sm:$0xff]
        %v809 = vld [vmem:[%s753 + $0xc0] sm:$0xff]
        %v810 = vld [vmem:[%s753 + $0xc8] sm:$0xff]
        %v811 = vld [vmem:[%s753 + $0xd0] sm:$0xff]
        %v812 = vld [vmem:[%s753 + $0xd8] sm:$0xff]
        %v813 = vld [vmem:[%s753 + $0xe0] sm:$0xff]
        %v814 = vld [vmem:[%s753 + $0xe8] sm:$0xff]
        %v815 = vld [vmem:[%s753 + $0xf0] sm:$0xff]
        %v816 = vld [vmem:[%s753 + $0xf8] sm:$0xff]
        %v817 = vld [vmem:[%s753 + $0x100] sm:$0xff]
        %v818 = vld [vmem:[%s753 + $0x108] sm:$0xff]
        %v819 = vld [vmem:[%s753 + $0x110] sm:$0xff]
        %v820 = vld [vmem:[%s753 + $0x118] sm:$0xff]
        %v821 = vld [vmem:[%s753 + $0x120] sm:$0xff]
        %v822 = vld [vmem:[%s753 + $0x128] sm:$0xff]
        %v823 = vld [vmem:[%s753 + $0x130] sm:$0xff]
        %v824 = vld [vmem:[%s753 + $0x138] sm:$0xff]
        %v825 = vld [vmem:[%s753 + $0x140] sm:$0xff]
        %v826 = vld [vmem:[%s753 + $0x148] sm:$0xff]
        %v827 = vld [vmem:[%s753 + $0x150] sm:$0xff]
        %v828 = vld [vmem:[%s753 + $0x158] sm:$0xff]
        %v829 = vld [vmem:[%s753 + $0x160] sm:$0xff]
        %v830 = vld [vmem:[%s753 + $0x168] sm:$0xff]
        %v831 = vld [vmem:[%s753 + $0x170] sm:$0xff]
        %v832 = vld [vmem:[%s753 + $0x178] sm:$0xff]
        %v833 = vld [vmem:[%s753 + $0x180] sm:$0xff]
        %v834 = vld [vmem:[%s753 + $0x188] sm:$0xff]
        %v835 = vld [vmem:[%s753 + $0x190] sm:$0xff]
        %v836 = vld [vmem:[%s753 + $0x198] sm:$0xff]
        %v837 = vld [vmem:[%s753 + $0x1a0] sm:$0xff]
        %v838 = vld [vmem:[%s753 + $0x1a8] sm:$0xff]
        %v839 = vld [vmem:[%s753 + $0x1b0] sm:$0xff]
        %v840 = vld [vmem:[%s753 + $0x1b8] sm:$0xff]
        %v841 = vld [vmem:[%s753 + $0x1c0] sm:$0xff]
        %v842 = vld [vmem:[%s753 + $0x1c8] sm:$0xff]
        %v843 = vld [vmem:[%s753 + $0x1d0] sm:$0xff]
        %v844 = vld [vmem:[%s753 + $0x1d8] sm:$0xff]
        %v845 = vld [vmem:[%s753 + $0x1e0] sm:$0xff]
        %v846 = vld [vmem:[%s753 + $0x1e8] sm:$0xff]
        %v847 = vld [vmem:[%s753 + $0x1f0] sm:$0xff]
        %v848 = vld [vmem:[%s753 + $0x1f8] sm:$0xff]
        %v849 = vld [vmem:[%s753 + $0x200] sm:$0xff]
        %v850 = vld [vmem:[%s753 + $0x208] sm:$0xff]
        %v851 = vld [vmem:[%s753 + $0x210] sm:$0xff]
        %v852 = vld [vmem:[%s753 + $0x218] sm:$0xff]
        %v853 = vld [vmem:[%s753 + $0x220] sm:$0xff]
        %v854 = vld [vmem:[%s753 + $0x228] sm:$0xff]
        %v855 = vld [vmem:[%s753 + $0x230] sm:$0xff]
        %v856 = vld [vmem:[%s753 + $0x238] sm:$0xff]
        %v857 = vld [vmem:[%s753 + $0x240] sm:$0xff]
        %v858 = vld [vmem:[%s753 + $0x248] sm:$0xf]
        %v859 = vld [vmem:[%s753 + $0x250] sm:$0xff]
        %v860 = vld [vmem:[%s753 + $0x258] sm:$0xff]
        %v861 = vld [vmem:[%s753 + $0x260] sm:$0xff]
        %v862 = vld [vmem:[%s753 + $0x268] sm:$0xff]
        %v863 = vld [vmem:[%s753 + $0x270] sm:$0xff]
        %v864 = vld [vmem:[%s753 + $0x278] sm:$0xff]
        %v865 = vld [vmem:[%s753 + $0x280] sm:$0xff]
        %v866 = vld [vmem:[%s753 + $0x288] sm:$0xff]
        %v867 = vld [vmem:[%s753 + $0x290] sm:$0xff]
        %v868 = vld [vmem:[%s753 + $0x298] sm:$0xff]
        %v869 = vld [vmem:[%s753 + $0x2a0] sm:$0xff]
        %v870 = vld [vmem:[%s753 + $0x2a8] sm:$0xff]
        %v871 = vld [vmem:[%s753 + $0x2b0] sm:$0xff]
        %v872 = vld [vmem:[%s753 + $0x2b8] sm:$0xff]
        %v873 = vld [vmem:[%s753 + $0x2c0] sm:$0xff]
        %v874 = vld [vmem:[%s753 + $0x2c8] sm:$0xff]
        %v875 = vld [vmem:[%s753 + $0x2d0] sm:$0xff]
        %v876 = vld [vmem:[%s753 + $0x2d8] sm:$0xff]
        %v877 = vld [vmem:[%s753 + $0x2e0] sm:$0xff]
        %v878 = vld [vmem:[%s753 + $0x2e8] sm:$0xff]
        %v879 = vld [vmem:[%s753 + $0x2f0] sm:$0xff]
        %v880 = vld [vmem:[%s753 + $0x2f8] sm:$0xff]
        %v881 = vld [vmem:[%s753 + $0x300] sm:$0xff]
        %v882 = vld [vmem:[%s753 + $0x308] sm:$0xff]
        %v883 = vld [vmem:[%s753 + $0x310] sm:$0xff]
        %v884 = vld [vmem:[%s753 + $0x318] sm:$0xff]
        %v885 = vld [vmem:[%s753 + $0x320] sm:$0xff]
        %v886 = vld [vmem:[%s753 + $0x328] sm:$0xff]
        %v887 = vld [vmem:[%s753 + $0x330] sm:$0xff]
        %v888 = vld [vmem:[%s753 + $0x338] sm:$0xff]
        %v889 = vld [vmem:[%s753 + $0x340] sm:$0xff]
        %v890 = vld [vmem:[%s753 + $0x348] sm:$0xff]
        %v891 = vld [vmem:[%s753 + $0x350] sm:$0xff]
        %v892 = vld [vmem:[%s753 + $0x358] sm:$0xff]
        %v893 = vld [vmem:[%s753 + $0x360] sm:$0xff]
        %v894 = vld [vmem:[%s753 + $0x368] sm:$0xff]
        %v895 = vld [vmem:[%s753 + $0x370] sm:$0xff]
        %v896 = vld [vmem:[%s753 + $0x378] sm:$0xff]
        %v897 = vld [vmem:[%s753 + $0x380] sm:$0xff]
        %v898 = vld [vmem:[%s753 + $0x388] sm:$0xff]
        %v899 = vld [vmem:[%s753 + $0x390] sm:$0xff]
        %v900 = vld [vmem:[%s753 + $0x398] sm:$0xff]
        %v901 = vld [vmem:[%s753 + $0x3a0] sm:$0xff]
        %v902 = vld [vmem:[%s753 + $0x3a8] sm:$0xff]
        %v903 = vld [vmem:[%s753 + $0x3b0] sm:$0xff]
        %v904 = vld [vmem:[%s753 + $0x3b8] sm:$0xff]
        %v905 = vld [vmem:[%s753 + $0x3c0] sm:$0xff]
        %v906 = vld [vmem:[%s753 + $0x3c8] sm:$0xff]
        %v907 = vld [vmem:[%s753 + $0x3d0] sm:$0xff]
        %v908 = vld [vmem:[%s753 + $0x3d8] sm:$0xff]
        %v909 = vld [vmem:[%s753 + $0x3e0] sm:$0xff]
        %v910 = vld [vmem:[%s753 + $0x3e8] sm:$0xff]
        %v911 = vld [vmem:[%s753 + $0x3f0] sm:$0xff]
        %v912 = vld [vmem:[%s753 + $0x3f8] sm:$0xff]
        %v913 = vld [vmem:[%s753 + $0x400] sm:$0xff]
        %v914 = vld [vmem:[%s753 + $0x408] sm:$0xff]
        %v915 = vld [vmem:[%s753 + $0x410] sm:$0xff]
        %v916 = vld [vmem:[%s753 + $0x418] sm:$0xff]
        %v917 = vld [vmem:[%s753 + $0x420] sm:$0xff]
        %v918 = vld [vmem:[%s753 + $0x428] sm:$0xff]
        %v919 = vld [vmem:[%s753 + $0x430] sm:$0xff]
        %v920 = vld [vmem:[%s753 + $0x438] sm:$0xff]
        %v921 = vld [vmem:[%s753 + $0x440] sm:$0xff]
        %v922 = vld [vmem:[%s753 + $0x448] sm:$0xff]
        %v923 = vld [vmem:[%s753 + $0x450] sm:$0xff]
        %v924 = vld [vmem:[%s753 + $0x458] sm:$0xff]
        %v925 = vld [vmem:[%s753 + $0x460] sm:$0xff]
        %v926 = vld [vmem:[%s753 + $0x468] sm:$0xff]
        %v927 = vld [vmem:[%s753 + $0x470] sm:$0xff]
        %v928 = vld [vmem:[%s753 + $0x478] sm:$0xff]
        %v929 = vld [vmem:[%s753 + $0x480] sm:$0xff]
        %v930 = vld [vmem:[%s753 + $0x488] sm:$0xff]
        %v931 = vld [vmem:[%s753 + $0x490] sm:$0xff]
        %v932 = vld [vmem:[%s753 + $0x498] sm:$0xf]
        %v933 = vadd.f32 %v785, 1.0
        %v934 = vadd.f32 %v786, 1.0
        %v935 = vadd.f32 %v787, 1.0
        %v936 = vadd.f32 %v788, 1.0
        %v937 = vadd.f32 %v789, 1.0
        %v938 = vadd.f32 %v790, 1.0
        %v939 = vadd.f32 %v791, 1.0
        %v940 = vadd.f32 %v792, 1.0
        %v941 = vadd.f32 %v793, 1.0
        %v942 = vadd.f32 %v794, 1.0
        %v943 = vadd.f32 %v795, 1.0
        %v944 = vadd.f32 %v796, 1.0
        %v945 = vadd.f32 %v797, 1.0
        %v946 = vadd.f32 %v798, 1.0
        %v947 = vadd.f32 %v799, 1.0
        %v948 = vadd.f32 %v800, 1.0
        %v949 = vadd.f32 %v801, 1.0
        %v950 = vadd.f32 %v802, 1.0
        %v951 = vadd.f32 %v803, 1.0
        %v952 = vadd.f32 %v804, 1.0
        %v953 = vadd.f32 %v805, 1.0
        %v954 = vadd.f32 %v806, 1.0
        %v955 = vadd.f32 %v807, 1.0
        %v956 = vadd.f32 %v808, 1.0
        %v957 = vadd.f32 %v809, 1.0
        %v958 = vadd.f32 %v810, 1.0
        %v959 = vadd.f32 %v811, 1.0
        %v960 = vadd.f32 %v812, 1.0
        %v961 = vadd.f32 %v813, 1.0
        %v962 = vadd.f32 %v814, 1.0
        %v963 = vadd.f32 %v815, 1.0
        %v964 = vadd.f32 %v816, 1.0
        %v965 = vadd.f32 %v817, 1.0
        %v966 = vadd.f32 %v818, 1.0
        %v967 = vadd.f32 %v819, 1.0
        %v968 = vadd.f32 %v820, 1.0
        %v969 = vadd.f32 %v821, 1.0
        %v970 = vadd.f32 %v822, 1.0
        %v971 = vadd.f32 %v823, 1.0
        %v972 = vadd.f32 %v824, 1.0
        %v973 = vadd.f32 %v825, 1.0
        %v974 = vadd.f32 %v826, 1.0
        %v975 = vadd.f32 %v827, 1.0
        %v976 = vadd.f32 %v828, 1.0
        %v977 = vadd.f32 %v829, 1.0
        %v978 = vadd.f32 %v830, 1.0
        %v979 = vadd.f32 %v831, 1.0
        %v980 = vadd.f32 %v832, 1.0
        %v981 = vadd.f32 %v833, 1.0
        %v982 = vadd.f32 %v834, 1.0
        %v983 = vadd.f32 %v835, 1.0
        %v984 = vadd.f32 %v836, 1.0
        %v985 = vadd.f32 %v837, 1.0
        %v986 = vadd.f32 %v838, 1.0
        %v987 = vadd.f32 %v839, 1.0
        %v988 = vadd.f32 %v840, 1.0
        %v989 = vadd.f32 %v841, 1.0
        %v990 = vadd.f32 %v842, 1.0
        %v991 = vadd.f32 %v843, 1.0
        %v992 = vadd.f32 %v844, 1.0
        %v993 = vadd.f32 %v845, 1.0
        %v994 = vadd.f32 %v846, 1.0
        %v995 = vadd.f32 %v847, 1.0
        %v996 = vadd.f32 %v848, 1.0
        %v997 = vadd.f32 %v849, 1.0
        %v998 = vadd.f32 %v850, 1.0
        %v999 = vadd.f32 %v851, 1.0
        %v1000 = vadd.f32 %v852, 1.0
        %v1001 = vadd.f32 %v853, 1.0
        %v1002 = vadd.f32 %v854, 1.0
        %v1003 = vadd.f32 %v855, 1.0
        %v1004 = vadd.f32 %v856, 1.0
        %v1005 = vadd.f32 %v857, 1.0
        %v1006 = vadd.f32 %v858, 1.0
        %v1007 = vadd.f32 %v859, 1.0
        %v1008 = vadd.f32 %v860, 1.0
        %v1009 = vadd.f32 %v861, 1.0
        %v1010 = vadd.f32 %v862, 1.0
        %v1011 = vadd.f32 %v863, 1.0
        %v1012 = vadd.f32 %v864, 1.0
        %v1013 = vadd.f32 %v865, 1.0
        %v1014 = vadd.f32 %v866, 1.0
        %v1015 = vadd.f32 %v867, 1.0
        %v1016 = vadd.f32 %v868, 1.0
        %v1017 = vadd.f32 %v869, 1.0
        %v1018 = vadd.f32 %v870, 1.0
        %v1019 = vadd.f32 %v871, 1.0
        %v1020 = vadd.f32 %v872, 1.0
        %v1021 = vadd.f32 %v873, 1.0
        %v1022 = vadd.f32 %v874, 1.0
        %v1023 = vadd.f32 %v875, 1.0
        %v1024 = vadd.f32 %v876, 1.0
        %v1025 = vadd.f32 %v877, 1.0
        %v1026 = vadd.f32 %v878, 1.0
        %v1027 = vadd.f32 %v879, 1.0
        %v1028 = vadd.f32 %v880, 1.0
        %v1029 = vadd.f32 %v881, 1.0
        %v1030 = vadd.f32 %v882, 1.0
        %v1031 = vadd.f32 %v883, 1.0
        %v1032 = vadd.f32 %v884, 1.0
        %v1033 = vadd.f32 %v885, 1.0
        %v1034 = vadd.f32 %v886, 1.0
        %v1035 = vadd.f32 %v887, 1.0
        %v1036 = vadd.f32 %v888, 1.0
        %v1037 = vadd.f32 %v889, 1.0
        %v1038 = vadd.f32 %v890, 1.0
        %v1039 = vadd.f32 %v891, 1.0
        %v1040 = vadd.f32 %v892, 1.0
        %v1041 = vadd.f32 %v893, 1.0
        %v1042 = vadd.f32 %v894, 1.0
        %v1043 = vadd.f32 %v895, 1.0
        %v1044 = vadd.f32 %v896, 1.0
        %v1045 = vadd.f32 %v897, 1.0
        %v1046 = vadd.f32 %v898, 1.0
        %v1047 = vadd.f32 %v899, 1.0
        %v1048 = vadd.f32 %v900, 1.0
        %v1049 = vadd.f32 %v901, 1.0
        %v1050 = vadd.f32 %v902, 1.0
        %v1051 = vadd.f32 %v903, 1.0
        %v1052 = vadd.f32 %v904, 1.0
        %v1053 = vadd.f32 %v905, 1.0
        %v1054 = vadd.f32 %v906, 1.0
        %v1055 = vadd.f32 %v907, 1.0
        %v1056 = vadd.f32 %v908, 1.0
        %v1057 = vadd.f32 %v909, 1.0
        %v1058 = vadd.f32 %v910, 1.0
        %v1059 = vadd.f32 %v911, 1.0
        %v1060 = vadd.f32 %v912, 1.0
        %v1061 = vadd.f32 %v913, 1.0
        %v1062 = vadd.f32 %v914, 1.0
        %v1063 = vadd.f32 %v915, 1.0
        %v1064 = vadd.f32 %v916, 1.0
        %v1065 = vadd.f32 %v917, 1.0
        %v1066 = vadd.f32 %v918, 1.0
        %v1067 = vadd.f32 %v919, 1.0
        %v1068 = vadd.f32 %v920, 1.0
        %v1069 = vadd.f32 %v921, 1.0
        %v1070 = vadd.f32 %v922, 1.0
        %v1071 = vadd.f32 %v923, 1.0
        %v1072 = vadd.f32 %v924, 1.0
        %v1073 = vadd.f32 %v925, 1.0
        %v1074 = vadd.f32 %v926, 1.0
        %v1075 = vadd.f32 %v927, 1.0
        %v1076 = vadd.f32 %v928, 1.0
        %v1077 = vadd.f32 %v929, 1.0
        %v1078 = vadd.f32 %v930, 1.0
        %v1079 = vadd.f32 %v931, 1.0
        %v1080 = vadd.f32 %v932, 1.0
        %v1081 = vld [vmem:[%s780] sm:$0xff]
        %v1082 = vld [vmem:[%s780 + $0x8] sm:$0xff]
        %v1083 = vld [vmem:[%s780 + $0x10] sm:$0xff]
        %v1084 = vld [vmem:[%s780 + $0x18] sm:$0xff]
        %v1085 = vld [vmem:[%s780 + $0x20] sm:$0xff]
        %v1086 = vld [vmem:[%s780 + $0x28] sm:$0xff]
        %v1087 = vld [vmem:[%s780 + $0x30] sm:$0xff]
        %v1088 = vld [vmem:[%s780 + $0x38] sm:$0xff]
        %v1089 = vld [vmem:[%s780 + $0x40] sm:$0xff]
        %v1090 = vld [vmem:[%s780 + $0x48] sm:$0xff]
        %v1091 = vld [vmem:[%s780 + $0x50] sm:$0xff]
        %v1092 = vld [vmem:[%s780 + $0x58] sm:$0xff]
        %v1093 = vld [vmem:[%s780 + $0x60] sm:$0xff]
        %v1094 = vld [vmem:[%s780 + $0x68] sm:$0xff]
        %v1095 = vld [vmem:[%s780 + $0x70] sm:$0xff]
        %v1096 = vld [vmem:[%s780 + $0x78] sm:$0xff]
        %v1097 = vld [vmem:[%s780 + $0x80] sm:$0xff]
        %v1098 = vld [vmem:[%s780 + $0x88] sm:$0xff]
        %v1099 = vld [vmem:[%s780 + $0x90] sm:$0xff]
        %v1100 = vld [vmem:[%s780 + $0x98] sm:$0xff]
        %v1101 = vld [vmem:[%s780 + $0xa0] sm:$0xff]
        %v1102 = vld [vmem:[%s780 + $0xa8] sm:$0xff]
        %v1103 = vld [vmem:[%s780 + $0xb0] sm:$0xff]
        %v1104 = vld [vmem:[%s780 + $0xb8] sm:$0xff]
        %v1105 = vld [vmem:[%s780 + $0xc0] sm:$0xff]
        %v1106 = vld [vmem:[%s780 + $0xc8] sm:$0xff]
        %v1107 = vld [vmem:[%s780 + $0xd0] sm:$0xff]
        %v1108 = vld [vmem:[%s780 + $0xd8] sm:$0xff]
        %v1109 = vld [vmem:[%s780 + $0xe0] sm:$0xff]
        %v1110 = vld [vmem:[%s780 + $0xe8] sm:$0xff]
        %v1111 = vld [vmem:[%s780 + $0xf0] sm:$0xff]
        %v1112 = vld [vmem:[%s780 + $0xf8] sm:$0xff]
        %v1113 = vld [vmem:[%s780 + $0x100] sm:$0xff]
        %v1114 = vld [vmem:[%s780 + $0x108] sm:$0xff]
        %v1115 = vld [vmem:[%s780 + $0x110] sm:$0xff]
        %v1116 = vld [vmem:[%s780 + $0x118] sm:$0xff]
        %v1117 = vld [vmem:[%s780 + $0x120] sm:$0xff]
        %v1118 = vld [vmem:[%s780 + $0x128] sm:$0xff]
        %v1119 = vld [vmem:[%s780 + $0x130] sm:$0xff]
        %v1120 = vld [vmem:[%s780 + $0x138] sm:$0xff]
        %v1121 = vld [vmem:[%s780 + $0x140] sm:$0xff]
        %v1122 = vld [vmem:[%s780 + $0x148] sm:$0xff]
        %v1123 = vld [vmem:[%s780 + $0x150] sm:$0xff]
        %v1124 = vld [vmem:[%s780 + $0x158] sm:$0xff]
        %v1125 = vld [vmem:[%s780 + $0x160] sm:$0xff]
        %v1126 = vld [vmem:[%s780 + $0x168] sm:$0xff]
        %v1127 = vld [vmem:[%s780 + $0x170] sm:$0xff]
        %v1128 = vld [vmem:[%s780 + $0x178] sm:$0xff]
        %v1129 = vld [vmem:[%s780 + $0x180] sm:$0xff]
        %v1130 = vld [vmem:[%s780 + $0x188] sm:$0xff]
        %v1131 = vld [vmem:[%s780 + $0x190] sm:$0xff]
        %v1132 = vld [vmem:[%s780 + $0x198] sm:$0xff]
        %v1133 = vld [vmem:[%s780 + $0x1a0] sm:$0xff]
        %v1134 = vld [vmem:[%s780 + $0x1a8] sm:$0xff]
        %v1135 = vld [vmem:[%s780 + $0x1b0] sm:$0xff]
        %v1136 = vld [vmem:[%s780 + $0x1b8] sm:$0xff]
        %v1137 = vld [vmem:[%s780 + $0x1c0] sm:$0xff]
        %v1138 = vld [vmem:[%s780 + $0x1c8] sm:$0xff]
        %v1139 = vld [vmem:[%s780 + $0x1d0] sm:$0xff]
        %v1140 = vld [vmem:[%s780 + $0x1d8] sm:$0xff]
        %v1141 = vld [vmem:[%s780 + $0x1e0] sm:$0xff]
        %v1142 = vld [vmem:[%s780 + $0x1e8] sm:$0xff]
        %v1143 = vld [vmem:[%s780 + $0x1f0] sm:$0xff]
        %v1144 = vld [vmem:[%s780 + $0x1f8] sm:$0xff]
        %v1145 = vld [vmem:[%s780 + $0x200] sm:$0xff]
        %v1146 = vld [vmem:[%s780 + $0x208] sm:$0xff]
        %v1147 = vld [vmem:[%s780 + $0x210] sm:$0xff]
        %v1148 = vld [vmem:[%s780 + $0x218] sm:$0xff]
        %v1149 = vld [vmem:[%s780 + $0x220] sm:$0xff]
        %v1150 = vld [vmem:[%s780 + $0x228] sm:$0xff]
        %v1151 = vld [vmem:[%s780 + $0x230] sm:$0xff]
        %v1152 = vld [vmem:[%s780 + $0x238] sm:$0xff]
        %v1153 = vld [vmem:[%s780 + $0x240] sm:$0xff]
        %v1154 = vld [vmem:[%s780 + $0x248] sm:$0xf]
        %v1155 = vmul.f32 %v933, %v1081
        %v1156 = vmul.f32 %v934, %v1082
        %v1157 = vmul.f32 %v935, %v1083
        %v1158 = vmul.f32 %v936, %v1084
        %v1159 = vmul.f32 %v937, %v1085
        %v1160 = vmul.f32 %v938, %v1086
        %v1161 = vmul.f32 %v939, %v1087
        %v1162 = vmul.f32 %v940, %v1088
        %v1163 = vmul.f32 %v941, %v1089
        %v1164 = vmul.f32 %v942, %v1090
        %v1165 = vmul.f32 %v943, %v1091
        %v1166 = vmul.f32 %v944, %v1092
        %v1167 = vmul.f32 %v945, %v1093
        %v1168 = vmul.f32 %v946, %v1094
        %v1169 = vmul.f32 %v947, %v1095
        %v1170 = vmul.f32 %v948, %v1096
        %v1171 = vmul.f32 %v949, %v1097
        %v1172 = vmul.f32 %v950, %v1098
        %v1173 = vmul.f32 %v951, %v1099
        %v1174 = vmul.f32 %v952, %v1100
        %v1175 = vmul.f32 %v953, %v1101
        %v1176 = vmul.f32 %v954, %v1102
        %v1177 = vmul.f32 %v955, %v1103
        %v1178 = vmul.f32 %v956, %v1104
        %v1179 = vmul.f32 %v957, %v1105
        %v1180 = vmul.f32 %v958, %v1106
        %v1181 = vmul.f32 %v959, %v1107
        %v1182 = vmul.f32 %v960, %v1108
        %v1183 = vmul.f32 %v961, %v1109
        %v1184 = vmul.f32 %v962, %v1110
        %v1185 = vmul.f32 %v963, %v1111
        %v1186 = vmul.f32 %v964, %v1112
        %v1187 = vmul.f32 %v965, %v1113
        %v1188 = vmul.f32 %v966, %v1114
        %v1189 = vmul.f32 %v967, %v1115
        %v1190 = vmul.f32 %v968, %v1116
        %v1191 = vmul.f32 %v969, %v1117
        %v1192 = vmul.f32 %v970, %v1118
        %v1193 = vmul.f32 %v971, %v1119
        %v1194 = vmul.f32 %v972, %v1120
        %v1195 = vmul.f32 %v973, %v1121
        %v1196 = vmul.f32 %v974, %v1122
        %v1197 = vmul.f32 %v975, %v1123
        %v1198 = vmul.f32 %v976, %v1124
        %v1199 = vmul.f32 %v977, %v1125
        %v1200 = vmul.f32 %v978, %v1126
        %v1201 = vmul.f32 %v979, %v1127
        %v1202 = vmul.f32 %v980, %v1128
        %v1203 = vmul.f32 %v981, %v1129
        %v1204 = vmul.f32 %v982, %v1130
        %v1205 = vmul.f32 %v983, %v1131
        %v1206 = vmul.f32 %v984, %v1132
        %v1207 = vmul.f32 %v985, %v1133
        %v1208 = vmul.f32 %v986, %v1134
        %v1209 = vmul.f32 %v987, %v1135
        %v1210 = vmul.f32 %v988, %v1136
        %v1211 = vmul.f32 %v989, %v1137
        %v1212 = vmul.f32 %v990, %v1138
        %v1213 = vmul.f32 %v991, %v1139
        %v1214 = vmul.f32 %v992, %v1140
        %v1215 = vmul.f32 %v993, %v1141
        %v1216 = vmul.f32 %v994, %v1142
        %v1217 = vmul.f32 %v995, %v1143
        %v1218 = vmul.f32 %v996, %v1144
        %v1219 = vmul.f32 %v997, %v1145
        %v1220 = vmul.f32 %v998, %v1146
        %v1221 = vmul.f32 %v999, %v1147
        %v1222 = vmul.f32 %v1000, %v1148
        %v1223 = vmul.f32 %v1001, %v1149
        %v1224 = vmul.f32 %v1002, %v1150
        %v1225 = vmul.f32 %v1003, %v1151
        %v1226 = vmul.f32 %v1004, %v1152
        %v1227 = vmul.f32 %v1005, %v1153
        %v1228 = vmul.f32 %v1006, %v1154
        %v1229 = vmul.f32 %v1007, %v1081
        %v1230 = vmul.f32 %v1008, %v1082
        %v1231 = vmul.f32 %v1009, %v1083
        %v1232 = vmul.f32 %v1010, %v1084
        %v1233 = vmul.f32 %v1011, %v1085
        %v1234 = vmul.f32 %v1012, %v1086
        %v1235 = vmul.f32 %v1013, %v1087
        %v1236 = vmul.f32 %v1014, %v1088
        %v1237 = vmul.f32 %v1015, %v1089
        %v1238 = vmul.f32 %v1016, %v1090
        %v1239 = vmul.f32 %v1017, %v1091
        %v1240 = vmul.f32 %v1018, %v1092
        %v1241 = vmul.f32 %v1019, %v1093
        %v1242 = vmul.f32 %v1020, %v1094
        %v1243 = vmul.f32 %v1021, %v1095
        %v1244 = vmul.f32 %v1022, %v1096
        %v1245 = vmul.f32 %v1023, %v1097
        %v1246 = vmul.f32 %v1024, %v1098
        %v1247 = vmul.f32 %v1025, %v1099
        %v1248 = vmul.f32 %v1026, %v1100
        %v1249 = vmul.f32 %v1027, %v1101
        %v1250 = vmul.f32 %v1028, %v1102
        %v1251 = vmul.f32 %v1029, %v1103
        %v1252 = vmul.f32 %v1030, %v1104
        %v1253 = vmul.f32 %v1031, %v1105
        %v1254 = vmul.f32 %v1032, %v1106
        %v1255 = vmul.f32 %v1033, %v1107
        %v1256 = vmul.f32 %v1034, %v1108
        %v1257 = vmul.f32 %v1035, %v1109
        %v1258 = vmul.f32 %v1036, %v1110
        %v1259 = vmul.f32 %v1037, %v1111
        %v1260 = vmul.f32 %v1038, %v1112
        %v1261 = vmul.f32 %v1039, %v1113
        %v1262 = vmul.f32 %v1040, %v1114
        %v1263 = vmul.f32 %v1041, %v1115
        %v1264 = vmul.f32 %v1042, %v1116
        %v1265 = vmul.f32 %v1043, %v1117
        %v1266 = vmul.f32 %v1044, %v1118
        %v1267 = vmul.f32 %v1045, %v1119
        %v1268 = vmul.f32 %v1046, %v1120
        %v1269 = vmul.f32 %v1047, %v1121
        %v1270 = vmul.f32 %v1048, %v1122
        %v1271 = vmul.f32 %v1049, %v1123
        %v1272 = vmul.f32 %v1050, %v1124
        %v1273 = vmul.f32 %v1051, %v1125
        %v1274 = vmul.f32 %v1052, %v1126
        %v1275 = vmul.f32 %v1053, %v1127
        %v1276 = vmul.f32 %v1054, %v1128
        %v1277 = vmul.f32 %v1055, %v1129
        %v1278 = vmul.f32 %v1056, %v1130
        %v1279 = vmul.f32 %v1057, %v1131
        %v1280 = vmul.f32 %v1058, %v1132
        %v1281 = vmul.f32 %v1059, %v1133
        %v1282 = vmul.f32 %v1060, %v1134
        %v1283 = vmul.f32 %v1061, %v1135
        %v1284 = vmul.f32 %v1062, %v1136
        %v1285 = vmul.f32 %v1063, %v1137
        %v1286 = vmul.f32 %v1064, %v1138
        %v1287 = vmul.f32 %v1065, %v1139
        %v1288 = vmul.f32 %v1066, %v1140
        %v1289 = vmul.f32 %v1067, %v1141
        %v1290 = vmul.f32 %v1068, %v1142
        %v1291 = vmul.f32 %v1069, %v1143
        %v1292 = vmul.f32 %v1070, %v1144
        %v1293 = vmul.f32 %v1071, %v1145
        %v1294 = vmul.f32 %v1072, %v1146
        %v1295 = vmul.f32 %v1073, %v1147
        %v1296 = vmul.f32 %v1074, %v1148
        %v1297 = vmul.f32 %v1075, %v1149
        %v1298 = vmul.f32 %v1076, %v1150
        %v1299 = vmul.f32 %v1077, %v1151
        %v1300 = vmul.f32 %v1078, %v1152
        %v1301 = vmul.f32 %v1079, %v1153
        %v1302 = vmul.f32 %v1080, %v1154
        %v1303 = vadd.f32 %v1155, %v1156
        %v1304 = vadd.f32 %v1303, %v1157
        %v1305 = vadd.f32 %v1304, %v1158
        %v1306 = vadd.f32 %v1305, %v1159
        %v1307 = vadd.f32 %v1306, %v1160
        %v1308 = vadd.f32 %v1307, %v1161
        %v1309 = vadd.f32 %v1308, %v1162
        %v1310 = vadd.f32 %v1309, %v1163
        %v1311 = vadd.f32 %v1310, %v1164
        %v1312 = vadd.f32 %v1311, %v1165
        %v1313 = vadd.f32 %v1312, %v1166
        %v1314 = vadd.f32 %v1313, %v1167
        %v1315 = vadd.f32 %v1314, %v1168
        %v1316 = vadd.f32 %v1315, %v1169
        %v1317 = vadd.f32 %v1316, %v1170
        %v1318 = vadd.f32 %v1317, %v1171
        %v1319 = vadd.f32 %v1318, %v1172
        %v1320 = vadd.f32 %v1319, %v1173
        %v1321 = vadd.f32 %v1320, %v1174
        %v1322 = vadd.f32 %v1321, %v1175
        %v1323 = vadd.f32 %v1322, %v1176
        %v1324 = vadd.f32 %v1323, %v1177
        %v1325 = vadd.f32 %v1324, %v1178
        %v1326 = vadd.f32 %v1325, %v1179
        %v1327 = vadd.f32 %v1326, %v1180
        %v1328 = vadd.f32 %v1327, %v1181
        %v1329 = vadd.f32 %v1328, %v1182
        %v1330 = vadd.f32 %v1329, %v1183
        %v1331 = vadd.f32 %v1330, %v1184
        %v1332 = vadd.f32 %v1331, %v1185
        %v1333 = vadd.f32 %v1332, %v1186
        %v1334 = vadd.f32 %v1333, %v1187
        %v1335 = vadd.f32 %v1334, %v1188
        %v1336 = vadd.f32 %v1335, %v1189
        %v1337 = vadd.f32 %v1336, %v1190
        %v1338 = vadd.f32 %v1337, %v1191
        %v1339 = vadd.f32 %v1338, %v1192
        %v1340 = vadd.f32 %v1339, %v1193
        %v1341 = vadd.f32 %v1340, %v1194
        %v1342 = vadd.f32 %v1341, %v1195
        %v1343 = vadd.f32 %v1342, %v1196
        %v1344 = vadd.f32 %v1343, %v1197
        %v1345 = vadd.f32 %v1344, %v1198
        %v1346 = vadd.f32 %v1345, %v1199
        %v1347 = vadd.f32 %v1346, %v1200
        %v1348 = vadd.f32 %v1347, %v1201
        %v1349 = vadd.f32 %v1348, %v1202
        %v1350 = vadd.f32 %v1349, %v1203
        %v1351 = vadd.f32 %v1350, %v1204
        %v1352 = vadd.f32 %v1351, %v1205
        %v1353 = vadd.f32 %v1352, %v1206
        %v1354 = vadd.f32 %v1353, %v1207
        %v1355 = vadd.f32 %v1354, %v1208
        %v1356 = vadd.f32 %v1355, %v1209
        %v1357 = vadd.f32 %v1356, %v1210
        %v1358 = vadd.f32 %v1357, %v1211
        %v1359 = vadd.f32 %v1358, %v1212
        %v1360 = vadd.f32 %v1359, %v1213
        %v1361 = vadd.f32 %v1360, %v1214
        %v1362 = vadd.f32 %v1361, %v1215
        %v1363 = vadd.f32 %v1362, %v1216
        %v1364 = vadd.f32 %v1363, %v1217
        %v1365 = vadd.f32 %v1364, %v1218
        %v1366 = vadd.f32 %v1365, %v1219
        %v1367 = vadd.f32 %v1366, %v1220
        %v1368 = vadd.f32 %v1367, %v1221
        %v1369 = vadd.f32 %v1368, %v1222
        %v1370 = vadd.f32 %v1369, %v1223
        %v1371 = vadd.f32 %v1370, %v1224
        %v1372 = vadd.f32 %v1371, %v1225
        %v1373 = vadd.f32 %v1372, %v1226
        %v1374 = vadd.f32 %v1373, %v1227
        %vm1375 = vcmask 1043456
        %v1376 = vsel %vm1375, %v1228, 0.0
        %v1377 = vadd.f32 %v1374, %v1376
        %1378 = vadd.xlane.f32.xlu0 %v1377
        %v1379 = vpop.xlane.xlu0 %1378
        %v1380 = vrot.slane %v1379, 4
        %v1381 = vadd.f32 %v1379, %v1380
        %v1382 = vrot.slane %v1381, 2
        %v1383 = vadd.f32 %v1381, %v1382
        %v1384 = vrot.slane %v1383, 1
        %v1385 = vadd.f32 %v1383, %v1384
        %v1386 = vadd.f32 %v1229, %v1230
        %v1387 = vadd.f32 %v1386, %v1231
        %v1388 = vadd.f32 %v1387, %v1232
        %v1389 = vadd.f32 %v1388, %v1233
        %v1390 = vadd.f32 %v1389, %v1234
        %v1391 = vadd.f32 %v1390, %v1235
        %v1392 = vadd.f32 %v1391, %v1236
        %v1393 = vadd.f32 %v1392, %v1237
        %v1394 = vadd.f32 %v1393, %v1238
        %v1395 = vadd.f32 %v1394, %v1239
        %v1396 = vadd.f32 %v1395, %v1240
        %v1397 = vadd.f32 %v1396, %v1241
        %v1398 = vadd.f32 %v1397, %v1242
        %v1399 = vadd.f32 %v1398, %v1243
        %v1400 = vadd.f32 %v1399, %v1244
        %v1401 = vadd.f32 %v1400, %v1245
        %v1402 = vadd.f32 %v1401, %v1246
        %v1403 = vadd.f32 %v1402, %v1247
        %v1404 = vadd.f32 %v1403, %v1248
        %v1405 = vadd.f32 %v1404, %v1249
        %v1406 = vadd.f32 %v1405, %v1250
        %v1407 = vadd.f32 %v1406, %v1251
        %v1408 = vadd.f32 %v1407, %v1252
        %v1409 = vadd.f32 %v1408, %v1253
        %v1410 = vadd.f32 %v1409, %v1254
        %v1411 = vadd.f32 %v1410, %v1255
        %v1412 = vadd.f32 %v1411, %v1256
        %v1413 = vadd.f32 %v1412, %v1257
        %v1414 = vadd.f32 %v1413, %v1258
        %v1415 = vadd.f32 %v1414, %v1259
        %v1416 = vadd.f32 %v1415, %v1260
        %v1417 = vadd.f32 %v1416, %v1261
        %v1418 = vadd.f32 %v1417, %v1262
        %v1419 = vadd.f32 %v1418, %v1263
        %v1420 = vadd.f32 %v1419, %v1264
        %v1421 = vadd.f32 %v1420, %v1265
        %v1422 = vadd.f32 %v1421, %v1266
        %v1423 = vadd.f32 %v1422, %v1267
        %v1424 = vadd.f32 %v1423, %v1268
        %v1425 = vadd.f32 %v1424, %v1269
        %v1426 = vadd.f32 %v1425, %v1270
        %v1427 = vadd.f32 %v1426, %v1271
        %v1428 = vadd.f32 %v1427, %v1272
        %v1429 = vadd.f32 %v1428, %v1273
        %v1430 = vadd.f32 %v1429, %v1274
        %v1431 = vadd.f32 %v1430, %v1275
        %v1432 = vadd.f32 %v1431, %v1276
        %v1433 = vadd.f32 %v1432, %v1277
        %v1434 = vadd.f32 %v1433, %v1278
        %v1435 = vadd.f32 %v1434, %v1279
        %v1436 = vadd.f32 %v1435, %v1280
        %v1437 = vadd.f32 %v1436, %v1281
        %v1438 = vadd.f32 %v1437, %v1282
        %v1439 = vadd.f32 %v1438, %v1283
        %v1440 = vadd.f32 %v1439, %v1284
        %v1441 = vadd.f32 %v1440, %v1285
        %v1442 = vadd.f32 %v1441, %v1286
        %v1443 = vadd.f32 %v1442, %v1287
        %v1444 = vadd.f32 %v1443, %v1288
        %v1445 = vadd.f32 %v1444, %v1289
        %v1446 = vadd.f32 %v1445, %v1290
        %v1447 = vadd.f32 %v1446, %v1291
        %v1448 = vadd.f32 %v1447, %v1292
        %v1449 = vadd.f32 %v1448, %v1293
        %v1450 = vadd.f32 %v1449, %v1294
        %v1451 = vadd.f32 %v1450, %v1295
        %v1452 = vadd.f32 %v1451, %v1296
        %v1453 = vadd.f32 %v1452, %v1297
        %v1454 = vadd.f32 %v1453, %v1298
        %v1455 = vadd.f32 %v1454, %v1299
        %v1456 = vadd.f32 %v1455, %v1300
        %v1457 = vadd.f32 %v1456, %v1301
        %v1458 = vsel %vm1375, %v1302, 0.0
        %v1459 = vadd.f32 %v1457, %v1458
        %1460 = vadd.xlane.f32.xlu0 %v1459
        %v1461 = vpop.xlane.xlu0 %1460
        %v1462 = vrot.slane %v1461, 4
        %v1463 = vadd.f32 %v1461, %v1462
        %v1464 = vrot.slane %v1463, 2
        %v1465 = vadd.f32 %v1463, %v1464
        %v1466 = vrot.slane %v1465, 1
        %v1467 = vadd.f32 %v1465, %v1466
        %vm1470 = vcmask 1041409
        %v1471 = vsel %vm1470, %v1467, %v1385
        %vm1473 = vcmask 1024
        %1474 = vst.msk [vmem:[%s784] sm:$0x3] %vm1473, %v1471
        %p1475 = scmp.lt.s32.totalorder %s13, 1
        %s1476 = scalar_select %p1475, %s13, 1
        %s1477 = smul.addr %s1476, 2
        %s1478 = scalar_lea.vmem %s2, %s1477
        // Predicated region
        $region67: #{module_test2_forward.1} parent=61 // pred_check
          %p1479 = pneg %p83
        $region68: #{module_test2_forward.1} parent=61 // pred_check_branch
          %1481 = sbr.rel (%p1479) target = $region70
        $region69: #{module_test2_forward.1} parent=61 // pred_region
          _
        $region70: #{module_test2_forward.1} parent=61 // pred_fallthru
          _
      $region62: #{module_test2_forward.1} parent=5 // pred_fallthru
        _
      %p1482 = scmp.le.s32.totalorder 2, %s8
      // Predicated region
      $region71: #{module_test2_forward.1} parent=5 // pred_check
        %p1483 = pneg %p1482
      $region72: #{module_test2_forward.1} parent=5 // pred_check_branch
        %1485 = sbr.rel (%p1483) target = $region74
      $region73: #{module_test2_forward.1} parent=5 // pred_region
        %s1486 = ssub.s32 %s8, 2
        // Predicated region
        $region75: #{module_test2_forward.1} parent=73 // pred_check
          %p1487 = pneg %p89
        $region76: #{module_test2_forward.1} parent=73 // pred_check_branch
          %1489 = sbr.rel (%p1487) target = $region78
        $region77: #{module_test2_forward.1} parent=73 // pred_region
          %p1490 = scmp.lt.s32.totalorder %s14, 1
          %s1491 = scalar_select %p1490, %s14, 1
          %s1492 = smul.addr %s1491, 2
          %s1493 = scalar_lea.vmem %s2, %s1492
        $region78: #{module_test2_forward.1} parent=73 // pred_fallthru
          _
      $region74: #{module_test2_forward.1} parent=5 // pred_fallthru
        _
    $region6: #{module_test2_forward.1} parent=1 // loop_footer
      %s12 = sadd.s32 1, %s8
    $region7: #{module_test2_forward.1} parent=1 // loop_footer_branch
      %7 = sbr.rel target = $region3
    $region8: #{module_test2_forward.1} parent=1 // loop_exit
      _

</llo_original>
